<compile_context>
chip_gen: v7x
topology: tpu7x:2x2x1
jax: 0.10.0
libtpu: 0.0.40
codegen_flags: <defaults>
</compile_context>

<pallas_src>
import numpy as np
import jax
import jax.numpy as jnp
from jax.experimental import pallas as pl
from jax.experimental.pallas import tpu as pltpu


def _round_up(x, m):
    return ((x + m - 1) // m) * m


def _area_pool_matrix(N, pn, pn_pad=None):
    """F.interpolate(mode='area') on 1D == adaptive_avg_pool1d: Pt @ x pools N -> pn.
    Rows [pn, pn_pad) are zero padding (sublane alignment inside the kernel)."""
    pn_pad = pn if pn_pad is None else pn_pad
    Pt = np.zeros((pn_pad, N), np.float32)
    for p in range(pn):
        start = (p * N) // pn
        end = -((-(p + 1) * N) // pn)      # ceil((p+1)*N/pn)
        Pt[p, start:end] = 1.0 / (end - start)
    return Pt


def _linear_upsample_matrix(pn, N, pn_pad=None):
    """F.interpolate(mode='linear', align_corners=False): Ut @ x maps pn -> N.
    Columns [pn, pn_pad) are exactly zero (they multiply the padded rows)."""
    pn_pad = pn if pn_pad is None else pn_pad
    Ut = np.zeros((N, pn_pad), np.float32)
    scale = pn / N
    for j in range(N):
        src = (j + 0.5) * scale - 0.5
        if src < 0.0:
            src = 0.0
        i0 = min(int(np.floor(src)), pn - 1)
        i1 = i0 + 1 if i0 < pn - 1 else i0
        w = src - i0
        Ut[j, i0] += 1.0 - w
        Ut[j, i1] += w
    return Ut


def _pick_batch_block(B, N, C, Kp, scales):
    """Largest divisor of B whose per-block working set fits a VMEM budget,
    with a mild preference for an even number of grid blocks (v7x: 2 TCs)."""
    pads = [_round_up(pn, 8) for pn in scales if pn != N]
    max_r_per_sample = max([N] + pads)

    def est_bytes(bb):
        rows = bb * N
        rmax = bb * max_r_per_sample
        return (4 * 4 * rows * C                       # double-buffered f in / f_hat out
                + 4 * (4 * rmax * Kp + 8 * rows * C)   # d/zet/iota/onehot + (rows,C) temps
                + 4 * (2 * Kp * C + Kp))               # resident codebook

    budget = 24 * 1024 * 1024
    ok = [d for d in range(1, B + 1)
          if B % d == 0 and d * N <= 2048 and est_bytes(d) <= budget]
    if not ok:
        ok = [1]
    bb_max = max(ok)
    even = [d for d in ok if (B // d) % 2 == 0 and 2 * d >= bb_max]
    return max(even) if even else bb_max


def _make_vq_kernel(scales, pn_pads, N, C, Kp, BB, needs_mat):
    n_mat = sum(needs_mat)
    rows = BB * N
    max_r = max([rows] + [BB * p for p in pn_pads])

    def kernel(*refs):
        f_ref, embT_ref, emb_ref, e2_ref = refs[0], refs[1], refs[2], refs[3]
        pt_refs = refs[4:4 + n_mat]
        ut_refs = refs[4 + n_mat:4 + 2 * n_mat]
        fhat_ref = refs[4 + 2 * n_mat]
        sq_ref = refs[4 + 2 * n_mat + 1]

        embT = embT_ref[...]             # (C, Kp)  pre-transposed codebook (distance)
        emb = emb_ref[...]               # (Kp, C)  codebook (dequant; pad rows are 0)
        e2 = e2_ref[...]                 # (1, Kp)  squared norms (+1e30 on pad codes)

        # Hoisted column-index iota; per scale we take an aligned prefix slice.
        iota_full = jax.lax.broadcasted_iota(jnp.int32, (max_r, Kp), 1)

        rest = f_ref[...]                # (rows, C); invariant: f_hat == f - rest
        sq_total = jnp.float32(0.0)

        mi = 0
        for si, pn in enumerate(scales):          # static unroll over scales
            if needs_mat[si]:
                pp = pn_pads[mi]
                r = BB * pp
                # per-sample area pooling, batched over the BB samples of this block
                z3 = jnp.einsum('bpn,bnc->bpc', pt_refs[mi][...],
                                rest.reshape(BB, N, C),
                                preferred_element_type=jnp.float32)
                z = z3.reshape(r, C)               # aligned merge (pp % 8 == 0)
            else:
                pp = N
                r = rows
                z = rest                           # pn == N -> identity pool

            # squared L2 distance to every (padded) code: (r, Kp)
            zet = jnp.dot(z, embT, preferred_element_type=jnp.float32)
            z2 = jnp.sum(z * z, axis=1, keepdims=True)
            d = z2 + e2 - 2.0 * zet

            # first-occurrence argmin (torch.argmin tie-break)
            iota = iota_full if r == max_r else iota_full[:r, :]
            dmin = jnp.min(d, axis=1, keepdims=True)
            idx = jnp.min(jnp.where(d <= dmin, iota, Kp), axis=1, keepdims=True)
            onehot = (iota == idx).astype(jnp.float32)

            # dequantize via one-hot matmul: (r, C)
            q = jnp.dot(onehot, emb, preferred_element_type=jnp.float32)

            # per-sample linear upsample back to N tokens per sample: (rows, C)
            if needs_mat[si]:
                h3 = jnp.einsum('bnp,bpc->bnc', ut_refs[mi][...],
                                q.reshape(BB, pp, C),
                                preferred_element_type=jnp.float32)
                h = h3.reshape(rows, C)
                mi += 1
            else:
                h = q

            rest = rest - h
            # mse_si == mean((f_hat_si - f)^2) == mean(rest^2)
            sq_total = sq_total + jnp.sum(rest * rest)

        fhat_ref[...] = f_ref[...] - rest
        sq_ref[...] = jnp.full((1, 1, 1), sq_total, jnp.float32)

    return kernel


def vector_quantizer_forward(f_BNC, embedding, scales, *, batch_block=None):
    """Forward pass of VectorQuantizer (collect_phase=False, i.e. init_steps=0)."""
    # TODO(synk): collect_phase buffer concat (self.collected_samples) and the
    # kmeans_init path are stateful host-side bookkeeping with no Pallas
    # equivalent; they do not affect the returned values and are skipped.
    f_BNC = jnp.asarray(f_BNC, jnp.float32)
    embedding = jnp.asarray(embedding, jnp.float32)
    B, N, C = f_BNC.shape
    K = embedding.shape[0]
    scales = tuple(int(s) for s in scales)
    SN = len(scales)

    # Codebook padded to a lane multiple of 128: lane-dense d / onehot and full
    # MXU column width.  Pad codes are zero vectors with huge squared norms so
    # they can never win the argmin.
    Kp = _round_up(max(K, 128), 128)
    emb_p = jnp.zeros((Kp, C), jnp.float32).at[:K, :].set(embedding)
    embT = jnp.transpose(emb_p)                                     # (C, Kp)
    e2 = jnp.concatenate(
        [jnp.sum(embedding * embedding, axis=1),
         jnp.full((Kp - K,), 1e30, jnp.float32)])[None, :]          # (1, Kp)

    BB = int(batch_block) if batch_block else _pick_batch_block(B, N, C, Kp, scales)
    assert B % BB == 0, "batch_block must divide the batch size"
    G = B // BB
    rows = BB * N

    # Per-sample pool / upsample operators, replicated over the BB samples of a
    # block so each is applied as ONE batched einsum per scale (useful FLOPs
    # only, no kron block-diagonal inflation).
    needs_mat, pn_pads, ptbs, utbs = [], [], [], []
    for pn in scales:
        if pn == N:
            needs_mat.append(False)
        else:
            needs_mat.append(True)
            pp = _round_up(pn, 8)
            pn_pads.append(pp)
            ptbs.append(jnp.asarray(
                np.broadcast_to(_area_pool_matrix(N, pn, pp), (BB, pp, N)).copy()))
            utbs.append(jnp.asarray(
                np.broadcast_to(_linear_upsample_matrix(pn, N, pp), (BB, N, pp)).copy()))

    f2d = f_BNC.reshape(B * N, C)                                   # sample-major rows

    kernel = _make_vq_kernel(scales, tuple(pn_pads), N, C, Kp, BB, tuple(needs_mat))

    in_specs = [
        pl.BlockSpec((rows, C), lambda g: (g, 0)),                  # f batch block
        pl.BlockSpec((C, Kp), lambda g: (0, 0)),                    # codebook^T (resident)
        pl.BlockSpec((Kp, C), lambda g: (0, 0)),                    # codebook   (resident)
        pl.BlockSpec((1, Kp), lambda g: (0, 0)),                    # codebook sq-norms
    ]
    for m in ptbs + utbs:
        in_specs.append(pl.BlockSpec(tuple(m.shape), lambda g: (0, 0, 0)))

    out_shape = (
        jax.ShapeDtypeStruct((B * N, C), jnp.float32),              # f_hat (row-flattened)
        jax.ShapeDtypeStruct((G, 1, 1), jnp.float32),               # per-block sum sq err
    )
    out_specs = (
        pl.BlockSpec((rows, C), lambda g: (g, 0)),
        pl.BlockSpec((1, 1, 1), lambda g: (g, 0, 0)),
    )

    # VMEM sizing (generation aware) + advisory cost estimate.
    op_bytes = 4 * sum(int(np.prod(m.shape)) for m in ptbs + utbs)
    blk_bytes = 4 * rows * C
    cb_bytes = 4 * (2 * Kp * C + Kp)
    max_r = max([rows] + [BB * p for p in pn_pads])
    vmem_est = (4 * blk_bytes                     # double-buffered f in / f_hat out
                + cb_bytes + op_bytes             # resident codebook + operators
                + 4 * 4 * max_r * Kp              # d / zet / iota / onehot
                + 8 * blk_bytes)                  # rest / z / q / h temporaries
    try:
        phys_vmem = int(pltpu.get_tpu_info().vmem_capacity_bytes)
    except Exception:
        phys_vmem = 64 * 1024 * 1024              # v7x per-TensorCore VMEM (smallest)
    vmem_limit = int(min(max(32 * 1024 * 1024, 2 * vmem_est), (phys_vmem * 3) // 4))

    flops = 0
    mi = 0
    for pn, nm in zip(scales, needs_mat):
        if nm:
            pp = pn_pads[mi]
            mi += 1
            r = BB * pp
            flops += 2 * BB * pp * N * C          # area pool (batched)
            flops += 2 * BB * N * pp * C          # linear upsample (batched)
        else:
            r = rows
        flops += 2 * r * C * Kp                   # distances
        flops += 2 * r * Kp * C                   # one-hot dequant
        flops += 4 * rows * C                     # residual update + mse
    flops *= G
    bytes_accessed = 4 * (2 * B * N * C) + cb_bytes + op_bytes

    fhat2d, sq = pl.pallas_call(
        kernel,
        out_shape=out_shape,
        grid_spec=pltpu.PrefetchScalarGridSpec(
            num_scalar_prefetch=0,
            grid=(G,),
            in_specs=in_specs,
            out_specs=out_specs,
        ),
        compiler_params=pltpu.CompilerParams(
            dimension_semantics=("parallel",),
            vmem_limit_bytes=vmem_limit,
        ),
        cost_estimate=pl.CostEstimate(
            flops=int(flops), transcendentals=0,
            bytes_accessed=int(bytes_accessed)),
    )(f2d, embT, emb_p, e2, *ptbs, *utbs)

    f_hat = fhat2d.reshape(B, N, C)
    # mse_si = sum_sq_si / (B*N*C); q_latent = mean_si(mse_si);
    # commitment = 0.25 * q_latent (identical values in the forward pass).
    # The straight-through (f_hat.data - f_no_grad) + f_BCN is a value no-op.
    qloss = jnp.sum(sq) / float(B * N * C * SN)
    closs = 0.25 * qloss
    return f_hat, closs, qloss


def vector_quantizer_reference(f_BNC, embedding, scales):
    """Pure-JAX reference with identical semantics (for a sanity check)."""
    f = jnp.asarray(f_BNC, jnp.float32)
    B, N, C = f.shape
    rest = f
    fhat = jnp.zeros_like(f)
    closs = 0.0
    qloss = 0.0
    for pn in scales:
        Pt = jnp.asarray(_area_pool_matrix(N, pn))
        Ut = jnp.asarray(_linear_upsample_matrix(pn, N))
        z = jnp.einsum('pn,bnc->bpc', Pt, rest).reshape(B * pn, C)
        d = (jnp.sum(z * z, axis=1, keepdims=True)
             + jnp.sum(embedding * embedding, axis=1)
             - 2.0 * z @ embedding.T)
        idx = jnp.argmin(d, axis=1)
        q = embedding[idx].reshape(B, pn, C)
        h = jnp.einsum('np,bpc->bnc', Ut, q)
        fhat = fhat + h
        rest = rest - h
        mse = jnp.mean((fhat - f) ** 2)
        closs = closs + 0.25 * mse
        qloss = qloss + mse
    SN = len(scales)
    return fhat, closs / SN, qloss / SN


if __name__ == "__main__":
    # Module hyper-parameters (small, deterministic)
    codebook_size = 64
    embedding_dim = 32
    scales = (1, 2, 4, 8, 16)
    B, N = 2, 16                    # N equals scales[-1] for this module

    key = jax.random.PRNGKey(0)
    k_emb, k_f = jax.random.split(key)
    # nn.Embedding weight ~ U(-1/codebook_size, 1/codebook_size)
    embedding = jax.random.uniform(
        k_emb, (codebook_size, embedding_dim), jnp.float32,
        minval=-1.0 / codebook_size, maxval=1.0 / codebook_size)
    f_BNC = jax.random.normal(k_f, (B, N, embedding_dim), jnp.float32)

    f_hat, closs, qloss = vector_quantizer_forward(f_BNC, embedding, scales)
    jax.block_until_ready((f_hat, closs, qloss))

    # Sanity check against the pure-JAX reference.
    f_ref, c_ref, q_ref = vector_quantizer_reference(f_BNC, embedding, scales)
    assert jnp.allclose(f_hat, f_ref, atol=1e-4, rtol=1e-4)
    assert jnp.allclose(closs, c_ref, atol=1e-5, rtol=1e-3)
    assert jnp.allclose(qloss, q_ref, atol=1e-5, rtol=1e-3)

    print("KERNEL_OK")
</pallas_src>

<mosaic_0001>
module attributes {stable_mosaic.version = 11 : i64} {
  func.func @kernel(%arg0: i32, %arg1: memref<16x32xf32, #tpu.memory_space<vmem>>, %arg2: memref<32x128xf32, #tpu.memory_space<vmem>>, %arg3: memref<128x32xf32, #tpu.memory_space<vmem>>, %arg4: memref<1x128xf32, #tpu.memory_space<vmem>>, %arg5: memref<1x8x16xf32, #tpu.memory_space<vmem>>, %arg6: memref<1x8x16xf32, #tpu.memory_space<vmem>>, %arg7: memref<1x8x16xf32, #tpu.memory_space<vmem>>, %arg8: memref<1x8x16xf32, #tpu.memory_space<vmem>>, %arg9: memref<1x16x8xf32, #tpu.memory_space<vmem>>, %arg10: memref<1x16x8xf32, #tpu.memory_space<vmem>>, %arg11: memref<1x16x8xf32, #tpu.memory_space<vmem>>, %arg12: memref<1x16x8xf32, #tpu.memory_space<vmem>>, %arg13: memref<16x32xf32, #tpu.memory_space<vmem>>, %arg14: memref<1x1x1xf32, #tpu.memory_space<vmem>>) attributes {dimension_semantics = [#tpu.dimension_semantics<parallel>], iteration_bounds = array<i64: 2>, scalar_prefetch = 0 : i64, scratch_operands = 0 : i64, tpu.core_type = #tpu.core_type<tc>, window_params = [{transform_indices = @transform_0, window_bounds = array<i64: 16, 32>}, {pipeline_mode = #tpu.pipeline_mode<synchronous>, transform_indices = @transform_1, window_bounds = array<i64: 32, 128>}, {pipeline_mode = #tpu.pipeline_mode<synchronous>, transform_indices = @transform_2, window_bounds = array<i64: 128, 32>}, {pipeline_mode = #tpu.pipeline_mode<synchronous>, transform_indices = @transform_3, window_bounds = array<i64: 1, 128>}, {pipeline_mode = #tpu.pipeline_mode<synchronous>, transform_indices = @transform_4, window_bounds = array<i64: 1, 8, 16>}, {pipeline_mode = #tpu.pipeline_mode<synchronous>, transform_indices = @transform_5, window_bounds = array<i64: 1, 8, 16>}, {pipeline_mode = #tpu.pipeline_mode<synchronous>, transform_indices = @transform_6, window_bounds = array<i64: 1, 8, 16>}, {pipeline_mode = #tpu.pipeline_mode<synchronous>, transform_indices = @transform_7, window_bounds = array<i64: 1, 8, 16>}, {pipeline_mode = #tpu.pipeline_mode<synchronous>, transform_indices = @transform_8, window_bounds = array<i64: 1, 16, 8>}, {pipeline_mode = #tpu.pipeline_mode<synchronous>, transform_indices = @transform_9, window_bounds = array<i64: 1, 16, 8>}, {pipeline_mode = #tpu.pipeline_mode<synchronous>, transform_indices = @transform_10, window_bounds = array<i64: 1, 16, 8>}, {pipeline_mode = #tpu.pipeline_mode<synchronous>, transform_indices = @transform_11, window_bounds = array<i64: 1, 16, 8>}, {transform_indices = @transform_12, window_bounds = array<i64: 16, 32>}, {transform_indices = @transform_13, window_bounds = array<i64: 1, 1, 1>}]} {
    %c0 = arith.constant 0 : index
    %c0_0 = arith.constant 0 : index
    %0 = vector.load %arg2[%c0, %c0_0] : memref<32x128xf32, #tpu.memory_space<vmem>>, vector<32x128xf32>
    %c0_1 = arith.constant 0 : index
    %c0_2 = arith.constant 0 : index
    %1 = vector.load %arg3[%c0_1, %c0_2] : memref<128x32xf32, #tpu.memory_space<vmem>>, vector<128x32xf32>
    %c0_3 = arith.constant 0 : index
    %c0_4 = arith.constant 0 : index
    %2 = vector.load %arg4[%c0_3, %c0_4] : memref<1x128xf32, #tpu.memory_space<vmem>>, vector<1x128xf32>
    %3 = tpu.iota {dimensions = array<i32: 1>} : vector<16x128xi32>
    %c0_5 = arith.constant 0 : index
    %c0_6 = arith.constant 0 : index
    %4 = vector.load %arg1[%c0_5, %c0_6] : memref<16x32xf32, #tpu.memory_space<vmem>>, vector<16x32xf32>
    %c0_7 = arith.constant 0 : index
    %c0_8 = arith.constant 0 : index
    %c0_9 = arith.constant 0 : index
    %5 = vector.load %arg5[%c0_7, %c0_8, %c0_9] : memref<1x8x16xf32, #tpu.memory_space<vmem>>, vector<1x8x16xf32>
    %6 = vector.shape_cast %4 : vector<16x32xf32> to vector<1x16x32xf32>
    "tpu.trace_start"() <{level = 10 : i32, message = "bpn,bnc->bpc"}> : () -> ()
    %cst = arith.constant dense<0.000000e+00> : vector<1x8x32xf32>
    %7 = tpu.matmul %5, %6, %cst {dimension_numbers = #tpu.dot_dimension_numbers<[2], [1], [1], [2], [0, 0, 0, 1, 1, 2], [0], [0]>} : vector<1x8x16xf32>, vector<1x16x32xf32>, vector<1x8x32xf32> -> vector<1x8x32xf32>
    "tpu.trace_stop"() : () -> ()
    %8 = vector.shape_cast %7 : vector<1x8x32xf32> to vector<8x32xf32>
    %cst_10 = arith.constant dense<0.000000e+00> : vector<8x128xf32>
    %9 = tpu.matmul %8, %0, %cst_10 {dimension_numbers = #tpu.dot_dimension_numbers<[1], [0], [0], [1], [0, 0, 1, 1], [], []>} : vector<8x32xf32>, vector<32x128xf32>, vector<8x128xf32> -> vector<8x128xf32>
    %10 = arith.mulf %8, %8 : vector<8x32xf32>
    %cst_11 = arith.constant dense<0.000000e+00> : vector<8xf32>
    %11 = vector.multi_reduction <add>, %10, %cst_11 [1] : vector<8x32xf32> to vector<8xf32>
    %12 = vector.shape_cast %11 : vector<8xf32> to vector<8x1xf32>
    %13 = vector.broadcast %12 : vector<8x1xf32> to vector<8x128xf32>
    %14 = vector.broadcast %2 : vector<1x128xf32> to vector<8x128xf32>
    %15 = arith.addf %13, %14 : vector<8x128xf32>
    %cst_12 = arith.constant 2.000000e+00 : f32
    %16 = vector.broadcast %cst_12 : f32 to vector<8x128xf32>
    %17 = arith.mulf %16, %9 : vector<8x128xf32>
    %18 = arith.subf %15, %17 : vector<8x128xf32>
    %19 = vector.extract_strided_slice %3 {offsets = [0, 0], sizes = [8, 128], strides = [1, 1]} : vector<16x128xi32> to vector<8x128xi32>
    %cst_13 = arith.constant dense<0x7F800000> : vector<8xf32>
    %20 = vector.multi_reduction <minimumf>, %18, %cst_13 [1] : vector<8x128xf32> to vector<8xf32>
    %21 = vector.shape_cast %20 : vector<8xf32> to vector<8x1xf32>
    %22 = vector.broadcast %21 : vector<8x1xf32> to vector<8x128xf32>
    %23 = arith.cmpf ole, %18, %22 : vector<8x128xf32>
    %c128_i32 = arith.constant 128 : i32
    %24 = vector.broadcast %c128_i32 : i32 to vector<8x128xi32>
    %25 = arith.select %23, %19, %24 : vector<8x128xi1>, vector<8x128xi32>
    %cst_14 = arith.constant dense<2147483647> : vector<8xi32>
    %26 = vector.multi_reduction <minsi>, %25, %cst_14 [1] : vector<8x128xi32> to vector<8xi32>
    %27 = vector.shape_cast %26 : vector<8xi32> to vector<8x1xi32>
    %28 = vector.broadcast %27 : vector<8x1xi32> to vector<8x128xi32>
    %29 = arith.cmpi eq, %19, %28 : vector<8x128xi32>
    %30 = arith.extui %29 : vector<8x128xi1> to vector<8x128xi32>
    %31 = arith.sitofp %30 : vector<8x128xi32> to vector<8x128xf32>
    %cst_15 = arith.constant dense<0.000000e+00> : vector<8x32xf32>
    %32 = tpu.matmul %31, %1, %cst_15 {dimension_numbers = #tpu.dot_dimension_numbers<[1], [0], [0], [1], [0, 0, 1, 1], [], []>} : vector<8x128xf32>, vector<128x32xf32>, vector<8x32xf32> -> vector<8x32xf32>
    %c0_16 = arith.constant 0 : index
    %c0_17 = arith.constant 0 : index
    %c0_18 = arith.constant 0 : index
    %33 = vector.load %arg9[%c0_16, %c0_17, %c0_18] : memref<1x16x8xf32, #tpu.memory_space<vmem>>, vector<1x16x8xf32>
    %34 = vector.shape_cast %32 : vector<8x32xf32> to vector<1x8x32xf32>
    "tpu.trace_start"() <{level = 10 : i32, message = "bnp,bpc->bnc"}> : () -> ()
    %cst_19 = arith.constant dense<0.000000e+00> : vector<1x16x32xf32>
    %35 = tpu.matmul %33, %34, %cst_19 {dimension_numbers = #tpu.dot_dimension_numbers<[2], [1], [1], [2], [0, 0, 0, 1, 1, 2], [0], [0]>} : vector<1x16x8xf32>, vector<1x8x32xf32>, vector<1x16x32xf32> -> vector<1x16x32xf32>
    "tpu.trace_stop"() : () -> ()
    %36 = vector.shape_cast %35 : vector<1x16x32xf32> to vector<16x32xf32>
    %37 = arith.subf %4, %36 : vector<16x32xf32>
    %38 = arith.mulf %37, %37 : vector<16x32xf32>
    %39 = vector.shape_cast %38 : vector<16x32xf32> to vector<1x16x32xf32>
    %cst_20 = arith.constant dense<0.000000e+00> : vector<1xf32>
    %40 = vector.multi_reduction <add>, %39, %cst_20 [1, 2] : vector<1x16x32xf32> to vector<1xf32>
    %41 = vector.shape_cast %40 : vector<1xf32> to vector<1x1x1xf32>
    %42 = vector.extract %41[0, 0, 0] : f32 from vector<1x1x1xf32>
    %cst_21 = arith.constant 0.000000e+00 : f32
    %43 = arith.addf %cst_21, %42 : f32
    %c0_22 = arith.constant 0 : index
    %c0_23 = arith.constant 0 : index
    %c0_24 = arith.constant 0 : index
    %44 = vector.load %arg6[%c0_22, %c0_23, %c0_24] : memref<1x8x16xf32, #tpu.memory_space<vmem>>, vector<1x8x16xf32>
    %45 = vector.shape_cast %37 : vector<16x32xf32> to vector<1x16x32xf32>
    "tpu.trace_start"() <{level = 10 : i32, message = "bpn,bnc->bpc"}> : () -> ()
    %cst_25 = arith.constant dense<0.000000e+00> : vector<1x8x32xf32>
    %46 = tpu.matmul %44, %45, %cst_25 {dimension_numbers = #tpu.dot_dimension_numbers<[2], [1], [1], [2], [0, 0, 0, 1, 1, 2], [0], [0]>} : vector<1x8x16xf32>, vector<1x16x32xf32>, vector<1x8x32xf32> -> vector<1x8x32xf32>
    "tpu.trace_stop"() : () -> ()
    %47 = vector.shape_cast %46 : vector<1x8x32xf32> to vector<8x32xf32>
    %cst_26 = arith.constant dense<0.000000e+00> : vector<8x128xf32>
    %48 = tpu.matmul %47, %0, %cst_26 {dimension_numbers = #tpu.dot_dimension_numbers<[1], [0], [0], [1], [0, 0, 1, 1], [], []>} : vector<8x32xf32>, vector<32x128xf32>, vector<8x128xf32> -> vector<8x128xf32>
    %49 = arith.mulf %47, %47 : vector<8x32xf32>
    %cst_27 = arith.constant dense<0.000000e+00> : vector<8xf32>
    %50 = vector.multi_reduction <add>, %49, %cst_27 [1] : vector<8x32xf32> to vector<8xf32>
    %51 = vector.shape_cast %50 : vector<8xf32> to vector<8x1xf32>
    %52 = vector.broadcast %51 : vector<8x1xf32> to vector<8x128xf32>
    %53 = vector.broadcast %2 : vector<1x128xf32> to vector<8x128xf32>
    %54 = arith.addf %52, %53 : vector<8x128xf32>
    %cst_28 = arith.constant 2.000000e+00 : f32
    %55 = vector.broadcast %cst_28 : f32 to vector<8x128xf32>
    %56 = arith.mulf %55, %48 : vector<8x128xf32>
    %57 = arith.subf %54, %56 : vector<8x128xf32>
    %58 = vector.extract_strided_slice %3 {offsets = [0, 0], sizes = [8, 128], strides = [1, 1]} : vector<16x128xi32> to vector<8x128xi32>
    %cst_29 = arith.constant dense<0x7F800000> : vector<8xf32>
    %59 = vector.multi_reduction <minimumf>, %57, %cst_29 [1] : vector<8x128xf32> to vector<8xf32>
    %60 = vector.shape_cast %59 : vector<8xf32> to vector<8x1xf32>
    %61 = vector.broadcast %60 : vector<8x1xf32> to vector<8x128xf32>
    %62 = arith.cmpf ole, %57, %61 : vector<8x128xf32>
    %c128_i32_30 = arith.constant 128 : i32
    %63 = vector.broadcast %c128_i32_30 : i32 to vector<8x128xi32>
    %64 = arith.select %62, %58, %63 : vector<8x128xi1>, vector<8x128xi32>
    %cst_31 = arith.constant dense<2147483647> : vector<8xi32>
    %65 = vector.multi_reduction <minsi>, %64, %cst_31 [1] : vector<8x128xi32> to vector<8xi32>
    %66 = vector.shape_cast %65 : vector<8xi32> to vector<8x1xi32>
    %67 = vector.broadcast %66 : vector<8x1xi32> to vector<8x128xi32>
    %68 = arith.cmpi eq, %58, %67 : vector<8x128xi32>
    %69 = arith.extui %68 : vector<8x128xi1> to vector<8x128xi32>
    %70 = arith.sitofp %69 : vector<8x128xi32> to vector<8x128xf32>
    %cst_32 = arith.constant dense<0.000000e+00> : vector<8x32xf32>
    %71 = tpu.matmul %70, %1, %cst_32 {dimension_numbers = #tpu.dot_dimension_numbers<[1], [0], [0], [1], [0, 0, 1, 1], [], []>} : vector<8x128xf32>, vector<128x32xf32>, vector<8x32xf32> -> vector<8x32xf32>
    %c0_33 = arith.constant 0 : index
    %c0_34 = arith.constant 0 : index
    %c0_35 = arith.constant 0 : index
    %72 = vector.load %arg10[%c0_33, %c0_34, %c0_35] : memref<1x16x8xf32, #tpu.memory_space<vmem>>, vector<1x16x8xf32>
    %73 = vector.shape_cast %71 : vector<8x32xf32> to vector<1x8x32xf32>
    "tpu.trace_start"() <{level = 10 : i32, message = "bnp,bpc->bnc"}> : () -> ()
    %cst_36 = arith.constant dense<0.000000e+00> : vector<1x16x32xf32>
    %74 = tpu.matmul %72, %73, %cst_36 {dimension_numbers = #tpu.dot_dimension_numbers<[2], [1], [1], [2], [0, 0, 0, 1, 1, 2], [0], [0]>} : vector<1x16x8xf32>, vector<1x8x32xf32>, vector<1x16x32xf32> -> vector<1x16x32xf32>
    "tpu.trace_stop"() : () -> ()
    %75 = vector.shape_cast %74 : vector<1x16x32xf32> to vector<16x32xf32>
    %76 = arith.subf %37, %75 : vector<16x32xf32>
    %77 = arith.mulf %76, %76 : vector<16x32xf32>
    %78 = vector.shape_cast %77 : vector<16x32xf32> to vector<1x16x32xf32>
    %cst_37 = arith.constant dense<0.000000e+00> : vector<1xf32>
    %79 = vector.multi_reduction <add>, %78, %cst_37 [1, 2] : vector<1x16x32xf32> to vector<1xf32>
    %80 = vector.shape_cast %79 : vector<1xf32> to vector<1x1x1xf32>
    %81 = vector.extract %80[0, 0, 0] : f32 from vector<1x1x1xf32>
    %82 = arith.addf %43, %81 : f32
    %c0_38 = arith.constant 0 : index
    %c0_39 = arith.constant 0 : index
    %c0_40 = arith.constant 0 : index
    %83 = vector.load %arg7[%c0_38, %c0_39, %c0_40] : memref<1x8x16xf32, #tpu.memory_space<vmem>>, vector<1x8x16xf32>
    %84 = vector.shape_cast %76 : vector<16x32xf32> to vector<1x16x32xf32>
    "tpu.trace_start"() <{level = 10 : i32, message = "bpn,bnc->bpc"}> : () -> ()
    %cst_41 = arith.constant dense<0.000000e+00> : vector<1x8x32xf32>
    %85 = tpu.matmul %83, %84, %cst_41 {dimension_numbers = #tpu.dot_dimension_numbers<[2], [1], [1], [2], [0, 0, 0, 1, 1, 2], [0], [0]>} : vector<1x8x16xf32>, vector<1x16x32xf32>, vector<1x8x32xf32> -> vector<1x8x32xf32>
    "tpu.trace_stop"() : () -> ()
    %86 = vector.shape_cast %85 : vector<1x8x32xf32> to vector<8x32xf32>
    %cst_42 = arith.constant dense<0.000000e+00> : vector<8x128xf32>
    %87 = tpu.matmul %86, %0, %cst_42 {dimension_numbers = #tpu.dot_dimension_numbers<[1], [0], [0], [1], [0, 0, 1, 1], [], []>} : vector<8x32xf32>, vector<32x128xf32>, vector<8x128xf32> -> vector<8x128xf32>
    %88 = arith.mulf %86, %86 : vector<8x32xf32>
    %cst_43 = arith.constant dense<0.000000e+00> : vector<8xf32>
    %89 = vector.multi_reduction <add>, %88, %cst_43 [1] : vector<8x32xf32> to vector<8xf32>
    %90 = vector.shape_cast %89 : vector<8xf32> to vector<8x1xf32>
    %91 = vector.broadcast %90 : vector<8x1xf32> to vector<8x128xf32>
    %92 = vector.broadcast %2 : vector<1x128xf32> to vector<8x128xf32>
    %93 = arith.addf %91, %92 : vector<8x128xf32>
    %cst_44 = arith.constant 2.000000e+00 : f32
    %94 = vector.broadcast %cst_44 : f32 to vector<8x128xf32>
    %95 = arith.mulf %94, %87 : vector<8x128xf32>
    %96 = arith.subf %93, %95 : vector<8x128xf32>
    %97 = vector.extract_strided_slice %3 {offsets = [0, 0], sizes = [8, 128], strides = [1, 1]} : vector<16x128xi32> to vector<8x128xi32>
    %cst_45 = arith.constant dense<0x7F800000> : vector<8xf32>
    %98 = vector.multi_reduction <minimumf>, %96, %cst_45 [1] : vector<8x128xf32> to vector<8xf32>
    %99 = vector.shape_cast %98 : vector<8xf32> to vector<8x1xf32>
    %100 = vector.broadcast %99 : vector<8x1xf32> to vector<8x128xf32>
    %101 = arith.cmpf ole, %96, %100 : vector<8x128xf32>
    %c128_i32_46 = arith.constant 128 : i32
    %102 = vector.broadcast %c128_i32_46 : i32 to vector<8x128xi32>
    %103 = arith.select %101, %97, %102 : vector<8x128xi1>, vector<8x128xi32>
    %cst_47 = arith.constant dense<2147483647> : vector<8xi32>
    %104 = vector.multi_reduction <minsi>, %103, %cst_47 [1] : vector<8x128xi32> to vector<8xi32>
    %105 = vector.shape_cast %104 : vector<8xi32> to vector<8x1xi32>
    %106 = vector.broadcast %105 : vector<8x1xi32> to vector<8x128xi32>
    %107 = arith.cmpi eq, %97, %106 : vector<8x128xi32>
    %108 = arith.extui %107 : vector<8x128xi1> to vector<8x128xi32>
    %109 = arith.sitofp %108 : vector<8x128xi32> to vector<8x128xf32>
    %cst_48 = arith.constant dense<0.000000e+00> : vector<8x32xf32>
    %110 = tpu.matmul %109, %1, %cst_48 {dimension_numbers = #tpu.dot_dimension_numbers<[1], [0], [0], [1], [0, 0, 1, 1], [], []>} : vector<8x128xf32>, vector<128x32xf32>, vector<8x32xf32> -> vector<8x32xf32>
    %c0_49 = arith.constant 0 : index
    %c0_50 = arith.constant 0 : index
    %c0_51 = arith.constant 0 : index
    %111 = vector.load %arg11[%c0_49, %c0_50, %c0_51] : memref<1x16x8xf32, #tpu.memory_space<vmem>>, vector<1x16x8xf32>
    %112 = vector.shape_cast %110 : vector<8x32xf32> to vector<1x8x32xf32>
    "tpu.trace_start"() <{level = 10 : i32, message = "bnp,bpc->bnc"}> : () -> ()
    %cst_52 = arith.constant dense<0.000000e+00> : vector<1x16x32xf32>
    %113 = tpu.matmul %111, %112, %cst_52 {dimension_numbers = #tpu.dot_dimension_numbers<[2], [1], [1], [2], [0, 0, 0, 1, 1, 2], [0], [0]>} : vector<1x16x8xf32>, vector<1x8x32xf32>, vector<1x16x32xf32> -> vector<1x16x32xf32>
    "tpu.trace_stop"() : () -> ()
    %114 = vector.shape_cast %113 : vector<1x16x32xf32> to vector<16x32xf32>
    %115 = arith.subf %76, %114 : vector<16x32xf32>
    %116 = arith.mulf %115, %115 : vector<16x32xf32>
    %117 = vector.shape_cast %116 : vector<16x32xf32> to vector<1x16x32xf32>
    %cst_53 = arith.constant dense<0.000000e+00> : vector<1xf32>
    %118 = vector.multi_reduction <add>, %117, %cst_53 [1, 2] : vector<1x16x32xf32> to vector<1xf32>
    %119 = vector.shape_cast %118 : vector<1xf32> to vector<1x1x1xf32>
    %120 = vector.extract %119[0, 0, 0] : f32 from vector<1x1x1xf32>
    %121 = arith.addf %82, %120 : f32
    %c0_54 = arith.constant 0 : index
    %c0_55 = arith.constant 0 : index
    %c0_56 = arith.constant 0 : index
    %122 = vector.load %arg8[%c0_54, %c0_55, %c0_56] : memref<1x8x16xf32, #tpu.memory_space<vmem>>, vector<1x8x16xf32>
    %123 = vector.shape_cast %115 : vector<16x32xf32> to vector<1x16x32xf32>
    "tpu.trace_start"() <{level = 10 : i32, message = "bpn,bnc->bpc"}> : () -> ()
    %cst_57 = arith.constant dense<0.000000e+00> : vector<1x8x32xf32>
    %124 = tpu.matmul %122, %123, %cst_57 {dimension_numbers = #tpu.dot_dimension_numbers<[2], [1], [1], [2], [0, 0, 0, 1, 1, 2], [0], [0]>} : vector<1x8x16xf32>, vector<1x16x32xf32>, vector<1x8x32xf32> -> vector<1x8x32xf32>
    "tpu.trace_stop"() : () -> ()
    %125 = vector.shape_cast %124 : vector<1x8x32xf32> to vector<8x32xf32>
    %cst_58 = arith.constant dense<0.000000e+00> : vector<8x128xf32>
    %126 = tpu.matmul %125, %0, %cst_58 {dimension_numbers = #tpu.dot_dimension_numbers<[1], [0], [0], [1], [0, 0, 1, 1], [], []>} : vector<8x32xf32>, vector<32x128xf32>, vector<8x128xf32> -> vector<8x128xf32>
    %127 = arith.mulf %125, %125 : vector<8x32xf32>
    %cst_59 = arith.constant dense<0.000000e+00> : vector<8xf32>
    %128 = vector.multi_reduction <add>, %127, %cst_59 [1] : vector<8x32xf32> to vector<8xf32>
    %129 = vector.shape_cast %128 : vector<8xf32> to vector<8x1xf32>
    %130 = vector.broadcast %129 : vector<8x1xf32> to vector<8x128xf32>
    %131 = vector.broadcast %2 : vector<1x128xf32> to vector<8x128xf32>
    %132 = arith.addf %130, %131 : vector<8x128xf32>
    %cst_60 = arith.constant 2.000000e+00 : f32
    %133 = vector.broadcast %cst_60 : f32 to vector<8x128xf32>
    %134 = arith.mulf %133, %126 : vector<8x128xf32>
    %135 = arith.subf %132, %134 : vector<8x128xf32>
    %136 = vector.extract_strided_slice %3 {offsets = [0, 0], sizes = [8, 128], strides = [1, 1]} : vector<16x128xi32> to vector<8x128xi32>
    %cst_61 = arith.constant dense<0x7F800000> : vector<8xf32>
    %137 = vector.multi_reduction <minimumf>, %135, %cst_61 [1] : vector<8x128xf32> to vector<8xf32>
    %138 = vector.shape_cast %137 : vector<8xf32> to vector<8x1xf32>
    %139 = vector.broadcast %138 : vector<8x1xf32> to vector<8x128xf32>
    %140 = arith.cmpf ole, %135, %139 : vector<8x128xf32>
    %c128_i32_62 = arith.constant 128 : i32
    %141 = vector.broadcast %c128_i32_62 : i32 to vector<8x128xi32>
    %142 = arith.select %140, %136, %141 : vector<8x128xi1>, vector<8x128xi32>
    %cst_63 = arith.constant dense<2147483647> : vector<8xi32>
    %143 = vector.multi_reduction <minsi>, %142, %cst_63 [1] : vector<8x128xi32> to vector<8xi32>
    %144 = vector.shape_cast %143 : vector<8xi32> to vector<8x1xi32>
    %145 = vector.broadcast %144 : vector<8x1xi32> to vector<8x128xi32>
    %146 = arith.cmpi eq, %136, %145 : vector<8x128xi32>
    %147 = arith.extui %146 : vector<8x128xi1> to vector<8x128xi32>
    %148 = arith.sitofp %147 : vector<8x128xi32> to vector<8x128xf32>
    %cst_64 = arith.constant dense<0.000000e+00> : vector<8x32xf32>
    %149 = tpu.matmul %148, %1, %cst_64 {dimension_numbers = #tpu.dot_dimension_numbers<[1], [0], [0], [1], [0, 0, 1, 1], [], []>} : vector<8x128xf32>, vector<128x32xf32>, vector<8x32xf32> -> vector<8x32xf32>
    %c0_65 = arith.constant 0 : index
    %c0_66 = arith.constant 0 : index
    %c0_67 = arith.constant 0 : index
    %150 = vector.load %arg12[%c0_65, %c0_66, %c0_67] : memref<1x16x8xf32, #tpu.memory_space<vmem>>, vector<1x16x8xf32>
    %151 = vector.shape_cast %149 : vector<8x32xf32> to vector<1x8x32xf32>
    "tpu.trace_start"() <{level = 10 : i32, message = "bnp,bpc->bnc"}> : () -> ()
    %cst_68 = arith.constant dense<0.000000e+00> : vector<1x16x32xf32>
    %152 = tpu.matmul %150, %151, %cst_68 {dimension_numbers = #tpu.dot_dimension_numbers<[2], [1], [1], [2], [0, 0, 0, 1, 1, 2], [0], [0]>} : vector<1x16x8xf32>, vector<1x8x32xf32>, vector<1x16x32xf32> -> vector<1x16x32xf32>
    "tpu.trace_stop"() : () -> ()
    %153 = vector.shape_cast %152 : vector<1x16x32xf32> to vector<16x32xf32>
    %154 = arith.subf %115, %153 : vector<16x32xf32>
    %155 = arith.mulf %154, %154 : vector<16x32xf32>
    %156 = vector.shape_cast %155 : vector<16x32xf32> to vector<1x16x32xf32>
    %cst_69 = arith.constant dense<0.000000e+00> : vector<1xf32>
    %157 = vector.multi_reduction <add>, %156, %cst_69 [1, 2] : vector<1x16x32xf32> to vector<1xf32>
    %158 = vector.shape_cast %157 : vector<1xf32> to vector<1x1x1xf32>
    %159 = vector.extract %158[0, 0, 0] : f32 from vector<1x1x1xf32>
    %160 = arith.addf %121, %159 : f32
    %cst_70 = arith.constant dense<0.000000e+00> : vector<16x128xf32>
    %161 = tpu.matmul %154, %0, %cst_70 {dimension_numbers = #tpu.dot_dimension_numbers<[1], [0], [0], [1], [0, 0, 1, 1], [], []>} : vector<16x32xf32>, vector<32x128xf32>, vector<16x128xf32> -> vector<16x128xf32>
    %162 = arith.mulf %154, %154 : vector<16x32xf32>
    %cst_71 = arith.constant dense<0.000000e+00> : vector<16xf32>
    %163 = vector.multi_reduction <add>, %162, %cst_71 [1] : vector<16x32xf32> to vector<16xf32>
    %164 = vector.shape_cast %163 : vector<16xf32> to vector<16x1xf32>
    %165 = vector.broadcast %164 : vector<16x1xf32> to vector<16x128xf32>
    %166 = vector.broadcast %2 : vector<1x128xf32> to vector<16x128xf32>
    %167 = arith.addf %165, %166 : vector<16x128xf32>
    %cst_72 = arith.constant 2.000000e+00 : f32
    %168 = vector.broadcast %cst_72 : f32 to vector<16x128xf32>
    %169 = arith.mulf %168, %161 : vector<16x128xf32>
    %170 = arith.subf %167, %169 : vector<16x128xf32>
    %cst_73 = arith.constant dense<0x7F800000> : vector<16xf32>
    %171 = vector.multi_reduction <minimumf>, %170, %cst_73 [1] : vector<16x128xf32> to vector<16xf32>
    %172 = vector.shape_cast %171 : vector<16xf32> to vector<16x1xf32>
    %173 = vector.broadcast %172 : vector<16x1xf32> to vector<16x128xf32>
    %174 = arith.cmpf ole, %170, %173 : vector<16x128xf32>
    %c128_i32_74 = arith.constant 128 : i32
    %175 = vector.broadcast %c128_i32_74 : i32 to vector<16x128xi32>
    %176 = arith.select %174, %3, %175 : vector<16x128xi1>, vector<16x128xi32>
    %cst_75 = arith.constant dense<2147483647> : vector<16xi32>
    %177 = vector.multi_reduction <minsi>, %176, %cst_75 [1] : vector<16x128xi32> to vector<16xi32>
    %178 = vector.shape_cast %177 : vector<16xi32> to vector<16x1xi32>
    %179 = vector.broadcast %178 : vector<16x1xi32> to vector<16x128xi32>
    %180 = arith.cmpi eq, %3, %179 : vector<16x128xi32>
    %181 = arith.extui %180 : vector<16x128xi1> to vector<16x128xi32>
    %182 = arith.sitofp %181 : vector<16x128xi32> to vector<16x128xf32>
    %cst_76 = arith.constant dense<0.000000e+00> : vector<16x32xf32>
    %183 = tpu.matmul %182, %1, %cst_76 {dimension_numbers = #tpu.dot_dimension_numbers<[1], [0], [0], [1], [0, 0, 1, 1], [], []>} : vector<16x128xf32>, vector<128x32xf32>, vector<16x32xf32> -> vector<16x32xf32>
    %184 = arith.subf %154, %183 : vector<16x32xf32>
    %185 = arith.mulf %184, %184 : vector<16x32xf32>
    %186 = vector.shape_cast %185 : vector<16x32xf32> to vector<1x16x32xf32>
    %cst_77 = arith.constant dense<0.000000e+00> : vector<1xf32>
    %187 = vector.multi_reduction <add>, %186, %cst_77 [1, 2] : vector<1x16x32xf32> to vector<1xf32>
    %188 = vector.shape_cast %187 : vector<1xf32> to vector<1x1x1xf32>
    %189 = vector.extract %188[0, 0, 0] : f32 from vector<1x1x1xf32>
    %190 = arith.addf %160, %189 : f32
    %c0_78 = arith.constant 0 : index
    %c0_79 = arith.constant 0 : index
    %191 = vector.load %arg1[%c0_78, %c0_79] : memref<16x32xf32, #tpu.memory_space<vmem>>, vector<16x32xf32>
    %192 = arith.subf %191, %184 : vector<16x32xf32>
    %c0_80 = arith.constant 0 : index
    %c0_81 = arith.constant 0 : index
    %193 = vector.load %arg13[%c0_80, %c0_81] : memref<16x32xf32, #tpu.memory_space<vmem>>, vector<16x32xf32>
    tpu.vector_store %arg13[%c0_80, %c0_81], %192 {strides = array<i32>} : memref<16x32xf32, #tpu.memory_space<vmem>>, vector<16x32xf32>,
    %194 = vector.broadcast %190 : f32 to vector<1x1x1xf32>
    %c0_82 = arith.constant 0 : index
    %c0_83 = arith.constant 0 : index
    %c0_84 = arith.constant 0 : index
    %195 = vector.load %arg14[%c0_82, %c0_83, %c0_84] : memref<1x1x1xf32, #tpu.memory_space<vmem>>, vector<1x1x1xf32>
    tpu.vector_store %arg14[%c0_82, %c0_83, %c0_84], %194 {strides = array<i32>} : memref<1x1x1xf32, #tpu.memory_space<vmem>>, vector<1x1x1xf32>,
    return
  }
  func.func @transform_0(%arg0: i32) -> (i32, i32) {
    %c0_i32 = arith.constant 0 : i32
    %c0_i32_0 = arith.constant 0 : i32
    return %arg0, %c0_i32 : i32, i32
  }
  func.func @transform_1(%arg0: i32) -> (i32, i32) {
    %c0_i32 = arith.constant 0 : i32
    %c0_i32_0 = arith.constant 0 : i32
    %c0_i32_1 = arith.constant 0 : i32
    return %c0_i32, %c0_i32_0 : i32, i32
  }
  func.func @transform_2(%arg0: i32) -> (i32, i32) {
    %c0_i32 = arith.constant 0 : i32
    %c0_i32_0 = arith.constant 0 : i32
    %c0_i32_1 = arith.constant 0 : i32
    return %c0_i32, %c0_i32_0 : i32, i32
  }
  func.func @transform_3(%arg0: i32) -> (i32, i32) {
    %c0_i32 = arith.constant 0 : i32
    %c0_i32_0 = arith.constant 0 : i32
    %c0_i32_1 = arith.constant 0 : i32
    return %c0_i32, %c0_i32_0 : i32, i32
  }
  func.func @transform_4(%arg0: i32) -> (i32, i32, i32) {
    %c0_i32 = arith.constant 0 : i32
    %c0_i32_0 = arith.constant 0 : i32
    %c0_i32_1 = arith.constant 0 : i32
    %c0_i32_2 = arith.constant 0 : i32
    return %c0_i32, %c0_i32_0, %c0_i32_1 : i32, i32, i32
  }
  func.func @transform_5(%arg0: i32) -> (i32, i32, i32) {
    %c0_i32 = arith.constant 0 : i32
    %c0_i32_0 = arith.constant 0 : i32
    %c0_i32_1 = arith.constant 0 : i32
    %c0_i32_2 = arith.constant 0 : i32
    return %c0_i32, %c0_i32_0, %c0_i32_1 : i32, i32, i32
  }
  func.func @transform_6(%arg0: i32) -> (i32, i32, i32) {
    %c0_i32 = arith.constant 0 : i32
    %c0_i32_0 = arith.constant 0 : i32
    %c0_i32_1 = arith.constant 0 : i32
    %c0_i32_2 = arith.constant 0 : i32
    return %c0_i32, %c0_i32_0, %c0_i32_1 : i32, i32, i32
  }
  func.func @transform_7(%arg0: i32) -> (i32, i32, i32) {
    %c0_i32 = arith.constant 0 : i32
    %c0_i32_0 = arith.constant 0 : i32
    %c0_i32_1 = arith.constant 0 : i32
    %c0_i32_2 = arith.constant 0 : i32
    return %c0_i32, %c0_i32_0, %c0_i32_1 : i32, i32, i32
  }
  func.func @transform_8(%arg0: i32) -> (i32, i32, i32) {
    %c0_i32 = arith.constant 0 : i32
    %c0_i32_0 = arith.constant 0 : i32
    %c0_i32_1 = arith.constant 0 : i32
    %c0_i32_2 = arith.constant 0 : i32
    return %c0_i32, %c0_i32_0, %c0_i32_1 : i32, i32, i32
  }
  func.func @transform_9(%arg0: i32) -> (i32, i32, i32) {
    %c0_i32 = arith.constant 0 : i32
    %c0_i32_0 = arith.constant 0 : i32
    %c0_i32_1 = arith.constant 0 : i32
    %c0_i32_2 = arith.constant 0 : i32
    return %c0_i32, %c0_i32_0, %c0_i32_1 : i32, i32, i32
  }
  func.func @transform_10(%arg0: i32) -> (i32, i32, i32) {
    %c0_i32 = arith.constant 0 : i32
    %c0_i32_0 = arith.constant 0 : i32
    %c0_i32_1 = arith.constant 0 : i32
    %c0_i32_2 = arith.constant 0 : i32
    return %c0_i32, %c0_i32_0, %c0_i32_1 : i32, i32, i32
  }
  func.func @transform_11(%arg0: i32) -> (i32, i32, i32) {
    %c0_i32 = arith.constant 0 : i32
    %c0_i32_0 = arith.constant 0 : i32
    %c0_i32_1 = arith.constant 0 : i32
    %c0_i32_2 = arith.constant 0 : i32
    return %c0_i32, %c0_i32_0, %c0_i32_1 : i32, i32, i32
  }
  func.func @transform_12(%arg0: i32) -> (i32, i32) {
    %c0_i32 = arith.constant 0 : i32
    %c0_i32_0 = arith.constant 0 : i32
    return %arg0, %c0_i32 : i32, i32
  }
  func.func @transform_13(%arg0: i32) -> (i32, i32, i32) {
    %c0_i32 = arith.constant 0 : i32
    %c0_i32_0 = arith.constant 0 : i32
    %c0_i32_1 = arith.constant 0 : i32
    return %arg0, %c0_i32, %c0_i32_0 : i32, i32, i32
  }
}

</mosaic_0001>

<llo_original>
// kernel: tpu_custom_call.1
$region0: #{tpu_custom_call.1}
  #allocation0 [shape = 'u32[]', space=smem, size = 0x4, offset = 0x4, fixed_abs, tag = 'smem constant byte address 0x4 - core index']
  #allocation1 [shape = 'u32[144,128]{1,0:T(1,128)}', space=vmem, size = 0x12000, scoped, tag = 'internal scratch']
  %s0 = inlined_call_operand.vmem [shape: f32[32,32], index: 0, kind: input, shape index: {}]
  %s1 = inlined_call_operand.vmem [shape: f32[32,128], index: 1, kind: input, shape index: {}]
  %s2 = inlined_call_operand.vmem [shape: f32[128,32], index: 2, kind: input, shape index: {}]
  %s3 = inlined_call_operand.vmem [shape: f32[1,128], index: 3, kind: input, shape index: {}]
  %s4 = inlined_call_operand.vmem [shape: f32[1,8,16], index: 4, kind: input, shape index: {}]
  %s5 = inlined_call_operand.vmem [shape: f32[1,8,16], index: 5, kind: input, shape index: {}]
  %s6 = inlined_call_operand.vmem [shape: f32[1,8,16], index: 6, kind: input, shape index: {}]
  %s7 = inlined_call_operand.vmem [shape: f32[1,8,16], index: 7, kind: input, shape index: {}]
  %s8 = inlined_call_operand.vmem [shape: f32[1,16,8], index: 8, kind: input, shape index: {}]
  %s9 = inlined_call_operand.vmem [shape: f32[1,16,8], index: 9, kind: input, shape index: {}]
  %s10 = inlined_call_operand.vmem [shape: f32[1,16,8], index: 10, kind: input, shape index: {}]
  %s11 = inlined_call_operand.vmem [shape: f32[1,16,8], index: 11, kind: input, shape index: {}]
  %s12 = inlined_call_operand.hbm [shape: f32[32,32], index: 12, kind: output, shape index: {0}]
  %s13 = inlined_call_operand.vmem [shape: f32[2,1,1], index: 13, kind: output, shape index: {1}]
  %14 = xla_tuple %s12, %s13
  %s15 = sld [smem:[#allocation0]]
  $region89: #{tpu_custom_call.1} parent=0
    _
  %s17 = ssub.s32 1, %s15
  %s18 = scalar_select 0, %s17, %s15
  $region1: #{tpu_custom_call.1} parent=0
    #allocation2 [shape = 'u8[16384]{0}', space=vmem, size = 0x4000, scoped, tag = 'output window, operand 0']
    #allocation3 [shape = 's32[2]{0}', space=sflag, size = 0x8, scoped, tag = 'scoped memory for tpu_custom_call.1']
    %19 = vsyncpa [#allocation3], 0
    %s20 = scalar_lea.sflag [#allocation3], 1
    %21 = vsyncpa %s20, 0
    loop: start=0, step=1, limit=4
    $region2: #{tpu_custom_call.1} parent=1 // loop_pre_header
      _
    $region3: #{tpu_custom_call.1} parent=1 // loop_header
      %s23 = sphi 0, %s27
      %p24 = scmp.ge.s32.totalorder %s23, 4
      %s33 = sphi 0, %s35
      %s36 = sphi 0, %s33
      %s37 = sphi 0, %s36
      %s53 = sphi 0, %s37
      %s57 = sphi 0, %s57
      %s59 = sphi 0, %s57
      %s60 = sphi 0, %s59
      %s74 = sphi 0, %s60
      %s78 = sphi 0, %s78
      %s80 = sphi 0, %s78
      %s81 = sphi 0, %s80
      %s95 = sphi 0, %s81
      %s99 = sphi 0, %s99
      %s101 = sphi 0, %s99
      %s102 = sphi 0, %s101
      %s116 = sphi 0, %s102
      %s120 = sphi 0, %s120
      %s122 = sphi 0, %s120
      %s123 = sphi 0, %s122
      %s137 = sphi 0, %s123
      %s141 = sphi 0, %s141
      %s143 = sphi 0, %s141
      %s144 = sphi 0, %s143
      %s158 = sphi 0, %s144
      %s162 = sphi 0, %s162
      %s164 = sphi 0, %s162
      %s165 = sphi 0, %s164
      %s179 = sphi 0, %s165
      %s183 = sphi 0, %s183
      %s185 = sphi 0, %s183
      %s186 = sphi 0, %s185
      %s200 = sphi 0, %s186
      %s204 = sphi 0, %s204
      %s206 = sphi 0, %s204
      %s207 = sphi 0, %s206
      %s221 = sphi 0, %s207
      %s225 = sphi 0, %s225
      %s227 = sphi 0, %s225
      %s228 = sphi 0, %s227
      %s242 = sphi 0, %s228
      %s246 = sphi 0, %s246
      %s248 = sphi 0, %s246
      %s249 = sphi 0, %s248
      %s263 = sphi 0, %s249
      %s267 = sphi 0, %s267
      %s269 = sphi 0, %s267
      %s270 = sphi 0, %s269
      %s284 = sphi 0, %s270
      %s290 = sphi 0, %s292
      %s293 = sphi 0, %s290
      %s294 = sphi 0, %s293
      %s310 = sphi 0, %s294
      %s316 = sphi 0, %s318
      %s319 = sphi 0, %s316
      %s320 = sphi 0, %s319
      %s336 = sphi 0, %s320
    $region4: #{tpu_custom_call.1} parent=1 // loop_header_branch
      %26 = sbr.rel (%p24) target = $region8
    $region5: #{tpu_custom_call.1} parent=1 // loop_body
      %s28 = ssub.s32 %s23, 1
      %s29 = ssub.s32 %s23, 2
      %s30 = sadd.s32 %s23, 1
      %s31 = ssub.s32 %s23, %s30
      %p32 = scmp.eq.s32.totalorder %s31, 0
      %s34 = sadd.s32 %s33, 1
      %s35 = scalar_select %p32, %s33, %s34
      %p38 = pneg %p32
      %p39 = scmp.eq.s32.totalorder %s23, 1
      %p40 = por %p38, %p39
      %p41 = scmp.ne.s32.totalorder %s33, %s36
      %p42 = scmp.eq.s32.totalorder %s23, 0
      %p43 = por %p41, %p42
      %p44 = scmp.ne.s32.totalorder %s33, %s36
      %p45 = scmp.eq.s32.totalorder %s28, 1
      %p46 = por %p44, %p45
      %p47 = scmp.ne.s32.totalorder %s36, %s37
      %p48 = scmp.eq.s32.totalorder %s28, 0
      %p49 = por %p47, %p48
      %p50 = scmp.ne.s32.totalorder %s36, %s37
      %p51 = scmp.eq.s32.totalorder %s29, 1
      %p52 = por %p50, %p51
      %p54 = scmp.ne.s32.totalorder %s37, %s53
      %p55 = scmp.eq.s32.totalorder %s29, 0
      %p56 = por %p54, %p55
      %s58 = sadd.s32 %s57, 1
      %p61 = scmp.eq.s32.totalorder %s23, 1
      %p62 = scmp.ne.s32.totalorder %s57, %s59
      %p63 = scmp.eq.s32.totalorder %s23, 0
      %p64 = por %p62, %p63
      %p65 = scmp.ne.s32.totalorder %s57, %s59
      %p66 = scmp.eq.s32.totalorder %s28, 1
      %p67 = por %p65, %p66
      %p68 = scmp.ne.s32.totalorder %s59, %s60
      %p69 = scmp.eq.s32.totalorder %s28, 0
      %p70 = por %p68, %p69
      %p71 = scmp.ne.s32.totalorder %s59, %s60
      %p72 = scmp.eq.s32.totalorder %s29, 1
      %p73 = por %p71, %p72
      %p75 = scmp.ne.s32.totalorder %s60, %s74
      %p76 = scmp.eq.s32.totalorder %s29, 0
      %p77 = por %p75, %p76
      %s79 = sadd.s32 %s78, 1
      %p82 = scmp.eq.s32.totalorder %s23, 1
      %p83 = scmp.ne.s32.totalorder %s78, %s80
      %p84 = scmp.eq.s32.totalorder %s23, 0
      %p85 = por %p83, %p84
      %p86 = scmp.ne.s32.totalorder %s78, %s80
      %p87 = scmp.eq.s32.totalorder %s28, 1
      %p88 = por %p86, %p87
      %p89 = scmp.ne.s32.totalorder %s80, %s81
      %p90 = scmp.eq.s32.totalorder %s28, 0
      %p91 = por %p89, %p90
      %p92 = scmp.ne.s32.totalorder %s80, %s81
      %p93 = scmp.eq.s32.totalorder %s29, 1
      %p94 = por %p92, %p93
      %p96 = scmp.ne.s32.totalorder %s81, %s95
      %p97 = scmp.eq.s32.totalorder %s29, 0
      %p98 = por %p96, %p97
      %s100 = sadd.s32 %s99, 1
      %p103 = scmp.eq.s32.totalorder %s23, 1
      %p104 = scmp.ne.s32.totalorder %s99, %s101
      %p105 = scmp.eq.s32.totalorder %s23, 0
      %p106 = por %p104, %p105
      %p107 = scmp.ne.s32.totalorder %s99, %s101
      %p108 = scmp.eq.s32.totalorder %s28, 1
      %p109 = por %p107, %p108
      %p110 = scmp.ne.s32.totalorder %s101, %s102
      %p111 = scmp.eq.s32.totalorder %s28, 0
      %p112 = por %p110, %p111
      %p113 = scmp.ne.s32.totalorder %s101, %s102
      %p114 = scmp.eq.s32.totalorder %s29, 1
      %p115 = por %p113, %p114
      %p117 = scmp.ne.s32.totalorder %s102, %s116
      %p118 = scmp.eq.s32.totalorder %s29, 0
      %p119 = por %p117, %p118
      %s121 = sadd.s32 %s120, 1
      %p124 = scmp.eq.s32.totalorder %s23, 1
      %p125 = scmp.ne.s32.totalorder %s120, %s122
      %p126 = scmp.eq.s32.totalorder %s23, 0
      %p127 = por %p125, %p126
      %p128 = scmp.ne.s32.totalorder %s120, %s122
      %p129 = scmp.eq.s32.totalorder %s28, 1
      %p130 = por %p128, %p129
      %p131 = scmp.ne.s32.totalorder %s122, %s123
      %p132 = scmp.eq.s32.totalorder %s28, 0
      %p133 = por %p131, %p132
      %p134 = scmp.ne.s32.totalorder %s122, %s123
      %p135 = scmp.eq.s32.totalorder %s29, 1
      %p136 = por %p134, %p135
      %p138 = scmp.ne.s32.totalorder %s123, %s137
      %p139 = scmp.eq.s32.totalorder %s29, 0
      %p140 = por %p138, %p139
      %s142 = sadd.s32 %s141, 1
      %p145 = scmp.eq.s32.totalorder %s23, 1
      %p146 = scmp.ne.s32.totalorder %s141, %s143
      %p147 = scmp.eq.s32.totalorder %s23, 0
      %p148 = por %p146, %p147
      %p149 = scmp.ne.s32.totalorder %s141, %s143
      %p150 = scmp.eq.s32.totalorder %s28, 1
      %p151 = por %p149, %p150
      %p152 = scmp.ne.s32.totalorder %s143, %s144
      %p153 = scmp.eq.s32.totalorder %s28, 0
      %p154 = por %p152, %p153
      %p155 = scmp.ne.s32.totalorder %s143, %s144
      %p156 = scmp.eq.s32.totalorder %s29, 1
      %p157 = por %p155, %p156
      %p159 = scmp.ne.s32.totalorder %s144, %s158
      %p160 = scmp.eq.s32.totalorder %s29, 0
      %p161 = por %p159, %p160
      %s163 = sadd.s32 %s162, 1
      %p166 = scmp.eq.s32.totalorder %s23, 1
      %p167 = scmp.ne.s32.totalorder %s162, %s164
      %p168 = scmp.eq.s32.totalorder %s23, 0
      %p169 = por %p167, %p168
      %p170 = scmp.ne.s32.totalorder %s162, %s164
      %p171 = scmp.eq.s32.totalorder %s28, 1
      %p172 = por %p170, %p171
      %p173 = scmp.ne.s32.totalorder %s164, %s165
      %p174 = scmp.eq.s32.totalorder %s28, 0
      %p175 = por %p173, %p174
      %p176 = scmp.ne.s32.totalorder %s164, %s165
      %p177 = scmp.eq.s32.totalorder %s29, 1
      %p178 = por %p176, %p177
      %p180 = scmp.ne.s32.totalorder %s165, %s179
      %p181 = scmp.eq.s32.totalorder %s29, 0
      %p182 = por %p180, %p181
      %s184 = sadd.s32 %s183, 1
      %p187 = scmp.eq.s32.totalorder %s23, 1
      %p188 = scmp.ne.s32.totalorder %s183, %s185
      %p189 = scmp.eq.s32.totalorder %s23, 0
      %p190 = por %p188, %p189
      %p191 = scmp.ne.s32.totalorder %s183, %s185
      %p192 = scmp.eq.s32.totalorder %s28, 1
      %p193 = por %p191, %p192
      %p194 = scmp.ne.s32.totalorder %s185, %s186
      %p195 = scmp.eq.s32.totalorder %s28, 0
      %p196 = por %p194, %p195
      %p197 = scmp.ne.s32.totalorder %s185, %s186
      %p198 = scmp.eq.s32.totalorder %s29, 1
      %p199 = por %p197, %p198
      %p201 = scmp.ne.s32.totalorder %s186, %s200
      %p202 = scmp.eq.s32.totalorder %s29, 0
      %p203 = por %p201, %p202
      %s205 = sadd.s32 %s204, 1
      %p208 = scmp.eq.s32.totalorder %s23, 1
      %p209 = scmp.ne.s32.totalorder %s204, %s206
      %p210 = scmp.eq.s32.totalorder %s23, 0
      %p211 = por %p209, %p210
      %p212 = scmp.ne.s32.totalorder %s204, %s206
      %p213 = scmp.eq.s32.totalorder %s28, 1
      %p214 = por %p212, %p213
      %p215 = scmp.ne.s32.totalorder %s206, %s207
      %p216 = scmp.eq.s32.totalorder %s28, 0
      %p217 = por %p215, %p216
      %p218 = scmp.ne.s32.totalorder %s206, %s207
      %p219 = scmp.eq.s32.totalorder %s29, 1
      %p220 = por %p218, %p219
      %p222 = scmp.ne.s32.totalorder %s207, %s221
      %p223 = scmp.eq.s32.totalorder %s29, 0
      %p224 = por %p222, %p223
      %s226 = sadd.s32 %s225, 1
      %p229 = scmp.eq.s32.totalorder %s23, 1
      %p230 = scmp.ne.s32.totalorder %s225, %s227
      %p231 = scmp.eq.s32.totalorder %s23, 0
      %p232 = por %p230, %p231
      %p233 = scmp.ne.s32.totalorder %s225, %s227
      %p234 = scmp.eq.s32.totalorder %s28, 1
      %p235 = por %p233, %p234
      %p236 = scmp.ne.s32.totalorder %s227, %s228
      %p237 = scmp.eq.s32.totalorder %s28, 0
      %p238 = por %p236, %p237
      %p239 = scmp.ne.s32.totalorder %s227, %s228
      %p240 = scmp.eq.s32.totalorder %s29, 1
      %p241 = por %p239, %p240
      %p243 = scmp.ne.s32.totalorder %s228, %s242
      %p244 = scmp.eq.s32.totalorder %s29, 0
      %p245 = por %p243, %p244
      %s247 = sadd.s32 %s246, 1
      %p250 = scmp.eq.s32.totalorder %s23, 1
      %p251 = scmp.ne.s32.totalorder %s246, %s248
      %p252 = scmp.eq.s32.totalorder %s23, 0
      %p253 = por %p251, %p252
      %p254 = scmp.ne.s32.totalorder %s246, %s248
      %p255 = scmp.eq.s32.totalorder %s28, 1
      %p256 = por %p254, %p255
      %p257 = scmp.ne.s32.totalorder %s248, %s249
      %p258 = scmp.eq.s32.totalorder %s28, 0
      %p259 = por %p257, %p258
      %p260 = scmp.ne.s32.totalorder %s248, %s249
      %p261 = scmp.eq.s32.totalorder %s29, 1
      %p262 = por %p260, %p261
      %p264 = scmp.ne.s32.totalorder %s249, %s263
      %p265 = scmp.eq.s32.totalorder %s29, 0
      %p266 = por %p264, %p265
      %s268 = sadd.s32 %s267, 1
      %p271 = scmp.eq.s32.totalorder %s23, 1
      %p272 = scmp.ne.s32.totalorder %s267, %s269
      %p273 = scmp.eq.s32.totalorder %s23, 0
      %p274 = por %p272, %p273
      %p275 = scmp.ne.s32.totalorder %s267, %s269
      %p276 = scmp.eq.s32.totalorder %s28, 1
      %p277 = por %p275, %p276
      %p278 = scmp.ne.s32.totalorder %s269, %s270
      %p279 = scmp.eq.s32.totalorder %s28, 0
      %p280 = por %p278, %p279
      %p281 = scmp.ne.s32.totalorder %s269, %s270
      %p282 = scmp.eq.s32.totalorder %s29, 1
      %p283 = por %p281, %p282
      %p285 = scmp.ne.s32.totalorder %s270, %s284
      %p286 = scmp.eq.s32.totalorder %s29, 0
      %p287 = por %p285, %p286
      %s288 = ssub.s32 %s23, %s30
      %p289 = scmp.eq.s32.totalorder %s288, 0
      %s291 = sadd.s32 %s290, 1
      %s292 = scalar_select %p289, %s290, %s291
      %p295 = pneg %p289
      %p296 = scmp.eq.s32.totalorder %s23, 1
      %p297 = por %p295, %p296
      %p298 = scmp.ne.s32.totalorder %s290, %s293
      %p299 = scmp.eq.s32.totalorder %s23, 0
      %p300 = por %p298, %p299
      %p301 = scmp.ne.s32.totalorder %s290, %s293
      %p302 = scmp.eq.s32.totalorder %s28, 1
      %p303 = por %p301, %p302
      %p304 = scmp.ne.s32.totalorder %s293, %s294
      %p305 = scmp.eq.s32.totalorder %s28, 0
      %p306 = por %p304, %p305
      %p307 = scmp.ne.s32.totalorder %s293, %s294
      %p308 = scmp.eq.s32.totalorder %s29, 1
      %p309 = por %p307, %p308
      %p311 = scmp.ne.s32.totalorder %s294, %s310
      %p312 = scmp.eq.s32.totalorder %s29, 0
      %p313 = por %p311, %p312
      %s314 = ssub.s32 %s23, %s30
      %p315 = scmp.eq.s32.totalorder %s314, 0
      %s317 = sadd.s32 %s316, 1
      %s318 = scalar_select %p315, %s316, %s317
      %p321 = pneg %p315
      %p322 = scmp.eq.s32.totalorder %s23, 1
      %p323 = por %p321, %p322
      %p324 = scmp.ne.s32.totalorder %s316, %s319
      %p325 = scmp.eq.s32.totalorder %s23, 0
      %p326 = por %p324, %p325
      %p327 = scmp.ne.s32.totalorder %s316, %s319
      %p328 = scmp.eq.s32.totalorder %s28, 1
      %p329 = por %p327, %p328
      %p330 = scmp.ne.s32.totalorder %s319, %s320
      %p331 = scmp.eq.s32.totalorder %s28, 0
      %p332 = por %p330, %p331
      %p333 = scmp.ne.s32.totalorder %s319, %s320
      %p334 = scmp.eq.s32.totalorder %s29, 1
      %p335 = por %p333, %p334
      %p337 = scmp.ne.s32.totalorder %s320, %s336
      %p338 = scmp.eq.s32.totalorder %s29, 0
      %p339 = por %p337, %p338
      %p340 = scmp.le.s32.totalorder 1, %s23
      %p341 = scmp.lt.s32.totalorder %s23, 3
      %p342 = pnand %p340, %p341
      %p343 = pneg %p342
      // Predicated region
      $region9: #{tpu_custom_call.1} parent=5 // pred_check
        _
      $region10: #{tpu_custom_call.1} parent=5 // pred_check_branch
        %345 = sbr.rel (%p342) target = $region12
      $region11: #{tpu_custom_call.1} parent=5 // pred_region
        %s346 = ssub.s32 %s23, 1
        // Predicated region
        $region13: #{tpu_custom_call.1} parent=11 // pred_check
          %p347 = pneg %p70
        $region14: #{tpu_custom_call.1} parent=11 // pred_check_branch
          %349 = sbr.rel (%p347) target = $region16
        $region15: #{tpu_custom_call.1} parent=11 // pred_region
          _
        $region16: #{tpu_custom_call.1} parent=11 // pred_fallthru
          _
        // Predicated region
        $region17: #{tpu_custom_call.1} parent=11 // pred_check
          %p350 = pneg %p91
        $region18: #{tpu_custom_call.1} parent=11 // pred_check_branch
          %352 = sbr.rel (%p350) target = $region20
        $region19: #{tpu_custom_call.1} parent=11 // pred_region
          _
        $region20: #{tpu_custom_call.1} parent=11 // pred_fallthru
          _
        // Predicated region
        $region21: #{tpu_custom_call.1} parent=11 // pred_check
          %p353 = pneg %p112
        $region22: #{tpu_custom_call.1} parent=11 // pred_check_branch
          %355 = sbr.rel (%p353) target = $region24
        $region23: #{tpu_custom_call.1} parent=11 // pred_region
          _
        $region24: #{tpu_custom_call.1} parent=11 // pred_fallthru
          _
        // Predicated region
        $region25: #{tpu_custom_call.1} parent=11 // pred_check
          %p356 = pneg %p133
        $region26: #{tpu_custom_call.1} parent=11 // pred_check_branch
          %358 = sbr.rel (%p356) target = $region28
        $region27: #{tpu_custom_call.1} parent=11 // pred_region
          _
        $region28: #{tpu_custom_call.1} parent=11 // pred_fallthru
          _
        // Predicated region
        $region29: #{tpu_custom_call.1} parent=11 // pred_check
          %p359 = pneg %p154
        $region30: #{tpu_custom_call.1} parent=11 // pred_check_branch
          %361 = sbr.rel (%p359) target = $region32
        $region31: #{tpu_custom_call.1} parent=11 // pred_region
          _
        $region32: #{tpu_custom_call.1} parent=11 // pred_fallthru
          _
        // Predicated region
        $region33: #{tpu_custom_call.1} parent=11 // pred_check
          %p362 = pneg %p175
        $region34: #{tpu_custom_call.1} parent=11 // pred_check_branch
          %364 = sbr.rel (%p362) target = $region36
        $region35: #{tpu_custom_call.1} parent=11 // pred_region
          _
        $region36: #{tpu_custom_call.1} parent=11 // pred_fallthru
          _
        // Predicated region
        $region37: #{tpu_custom_call.1} parent=11 // pred_check
          %p365 = pneg %p196
        $region38: #{tpu_custom_call.1} parent=11 // pred_check_branch
          %367 = sbr.rel (%p365) target = $region40
        $region39: #{tpu_custom_call.1} parent=11 // pred_region
          _
        $region40: #{tpu_custom_call.1} parent=11 // pred_fallthru
          _
        // Predicated region
        $region41: #{tpu_custom_call.1} parent=11 // pred_check
          %p368 = pneg %p217
        $region42: #{tpu_custom_call.1} parent=11 // pred_check_branch
          %370 = sbr.rel (%p368) target = $region44
        $region43: #{tpu_custom_call.1} parent=11 // pred_region
          _
        $region44: #{tpu_custom_call.1} parent=11 // pred_fallthru
          _
        // Predicated region
        $region45: #{tpu_custom_call.1} parent=11 // pred_check
          %p371 = pneg %p238
        $region46: #{tpu_custom_call.1} parent=11 // pred_check_branch
          %373 = sbr.rel (%p371) target = $region48
        $region47: #{tpu_custom_call.1} parent=11 // pred_region
          _
        $region48: #{tpu_custom_call.1} parent=11 // pred_fallthru
          _
        // Predicated region
        $region49: #{tpu_custom_call.1} parent=11 // pred_check
          %p374 = pneg %p259
        $region50: #{tpu_custom_call.1} parent=11 // pred_check_branch
          %376 = sbr.rel (%p374) target = $region52
        $region51: #{tpu_custom_call.1} parent=11 // pred_region
          _
        $region52: #{tpu_custom_call.1} parent=11 // pred_fallthru
          _
        // Predicated region
        $region53: #{tpu_custom_call.1} parent=11 // pred_check
          %p377 = pneg %p280
        $region54: #{tpu_custom_call.1} parent=11 // pred_check_branch
          %379 = sbr.rel (%p377) target = $region56
        $region55: #{tpu_custom_call.1} parent=11 // pred_region
          _
        $region56: #{tpu_custom_call.1} parent=11 // pred_fallthru
          _
      $region12: #{tpu_custom_call.1} parent=5 // pred_fallthru
        _
      %p380 = scmp.lt.s32.totalorder %s23, 2
      // Predicated region
      $region57: #{tpu_custom_call.1} parent=5 // pred_check
        %p381 = pneg %p380
      $region58: #{tpu_custom_call.1} parent=5 // pred_check_branch
        %383 = sbr.rel (%p381) target = $region60
      $region59: #{tpu_custom_call.1} parent=5 // pred_region
        // Predicated region
        $region61: #{tpu_custom_call.1} parent=59 // pred_check
          %p384 = pneg %p43
        $region62: #{tpu_custom_call.1} parent=59 // pred_check_branch
          %386 = sbr.rel (%p384) target = $region64
        $region63: #{tpu_custom_call.1} parent=59 // pred_region
          %s387 = smul.u32 2, %s23
          %p388 = scmp.lt.s32.totalorder %s387, 3
          %s389 = scalar_select %p388, %s387, 3
          %s390 = smul.addr %s389, 8
          %s391 = scalar_lea.vmem %s0, %s390
          %s392 = smul.u32 2, %s23
        $region64: #{tpu_custom_call.1} parent=59 // pred_fallthru
          _
      $region60: #{tpu_custom_call.1} parent=5 // pred_fallthru
        _
      %p393 = scmp.le.s32.totalorder 1, %s23
      %p394 = scmp.lt.s32.totalorder %s23, 3
      %p395 = pnand %p393, %p394
      %p396 = pneg %p395
      // Predicated region
      $region65: #{tpu_custom_call.1} parent=5 // pred_check
        _
      $region66: #{tpu_custom_call.1} parent=5 // pred_check_branch
        %398 = sbr.rel (%p395) target = $region68
      $region67: #{tpu_custom_call.1} parent=5 // pred_region
        %s399 = ssub.s32 %s23, 1
        %s400 = smul.u32 2, %s28
        %p401 = scmp.lt.s32.totalorder %s400, 3
        %s402 = scalar_select %p401, %s400, 3
        %s403 = smul.addr %s402, 8
        %s404 = scalar_lea.vmem %s0, %s403
        %p405 = pneg %p49
        %p406 = pneg %p46
        %p407 = pneg %p70
        %p408 = pneg %p67
        %p409 = pneg %p91
        %p410 = pneg %p88
        %p411 = pneg %p112
        %p412 = pneg %p109
        %p413 = pneg %p133
        %p414 = pneg %p130
        %p415 = pneg %p154
        %p416 = pneg %p151
        %p417 = pneg %p175
        %p418 = pneg %p172
        %p419 = pneg %p196
        %p420 = pneg %p193
        %p421 = pneg %p217
        %p422 = pneg %p214
        %p423 = pneg %p238
        %p424 = pneg %p235
        %p425 = pneg %p259
        %p426 = pneg %p256
        %p427 = pneg %p280
        %p428 = pneg %p277
        %p429 = pneg %p306
        %p430 = pneg %p303
        %s431 = sand.u32 %s293, 1
        %s432 = scalar_lea.sflag [#allocation3], %s431
        %s433 = sand.u32 %s293, 1
        %s434 = smul.addr %s433, 16
        %s435 = scalar_lea.vmem [#allocation2], %s434
        %p436 = pneg %p332
        %p437 = pneg %p329
        %p438 = scmp.lt.s32.totalorder %s28, 1
        %s439 = scalar_select %p438, %s28, 1
        %s440 = scalar_lea.vmem %s13, %s439
        %s441 = smul.u32 2, %s28
        %p442 = scmp.lt.s32.totalorder %s441, 3
        %s443 = scalar_select %p442, %s441, 3
        %s444 = smul.addr %s443, 8
        %s445 = scalar_lea.vmem %s0, %s444
        %s446 = smul.u32 2, %s28
        %s447 = smul.u32 2, %s28
        %p448 = scmp.lt.s32.totalorder %s28, 1
        %s449 = scalar_select %p448, %s28, 1
        %s450 = scalar_lea.vmem %s13, %s449
        %v451 = vld [vmem:[%s1] sm:$0xff]
        %v452 = vld [vmem:[%s1 + $0x8] sm:$0xff]
        %v453 = vld [vmem:[%s1 + $0x10] sm:$0xff]
        %v454 = vld [vmem:[%s1 + $0x18] sm:$0xff]
        %v455 = vld [vmem:[%s2] sm:$0xff]
        %v456 = vld [vmem:[%s2 + $0x8] sm:$0xff]
        %v457 = vld [vmem:[%s2 + $0x10] sm:$0xff]
        %v458 = vld [vmem:[%s2 + $0x18] sm:$0xff]
        %v459 = vld [vmem:[%s2 + $0x20] sm:$0xff]
        %v460 = vld [vmem:[%s2 + $0x28] sm:$0xff]
        %v461 = vld [vmem:[%s2 + $0x30] sm:$0xff]
        %v462 = vld [vmem:[%s2 + $0x38] sm:$0xff]
        %v463 = vld [vmem:[%s2 + $0x40] sm:$0xff]
        %v464 = vld [vmem:[%s2 + $0x48] sm:$0xff]
        %v465 = vld [vmem:[%s2 + $0x50] sm:$0xff]
        %v466 = vld [vmem:[%s2 + $0x58] sm:$0xff]
        %v467 = vld [vmem:[%s2 + $0x60] sm:$0xff]
        %v468 = vld [vmem:[%s2 + $0x68] sm:$0xff]
        %v469 = vld [vmem:[%s2 + $0x70] sm:$0xff]
        %v470 = vld [vmem:[%s2 + $0x78] sm:$0xff]
        %v471 = vld [vmem:[%s3] sm:$0x1]
        %v472 = vlaneseq
        %v473 = vand.u32 %v472, 127
        %v474 = vld [vmem:[%s445] sm:$0xff]
        %v475 = vld [vmem:[%s445 + $0x8] sm:$0xff]
        %v476 = vld [vmem:[%s4] sm:$0xff]
        %vm477 = vcmask 130048
        %v479 = vsel %vm477, %v476, 0
        %481 = vmatprep.subr.mxu0 0.0
        %482 = vmatpush1.msra.mxu0 %v474
        %483 = vmatprep.subr.mxu0 0.0
        %484 = vmatpush1.msra.mxu0 %v475
        %485 = vmatprep.subr.mxu0 0.0
        %486 = vmatpush1.msra.mxu0 0.0
        %487 = vmatprep.subr.mxu0 0.0
        %488 = vmatpush1.msra.mxu0 0.0
        %489 = vmatprep.subr.mxu0 0.0
        %490 = vmatpush1.msra.mxu0 0.0
        %491 = vmatprep.subr.mxu0 0.0
        %492 = vmatpush1.msra.mxu0 0.0
        %493 = vmatprep.subr.mxu0 0.0
        %494 = vmatpush1.msra.mxu0 0.0
        %495 = vmatprep.subr.mxu0 0.0
        %496 = vmatpush1.msra.mxu0 0.0
        %497 = vmatprep.subr.mxu0 0.0
        %498 = vmatpush1.msra.mxu0 0.0
        %499 = vmatprep.subr.mxu0 0.0
        %500 = vmatpush1.msra.mxu0 0.0
        %501 = vmatprep.subr.mxu0 0.0
        %502 = vmatpush1.msra.mxu0 0.0
        %503 = vmatprep.subr.mxu0 0.0
        %504 = vmatpush1.msra.mxu0 0.0
        %505 = vmatprep.subr.mxu0 0.0
        %506 = vmatpush1.msra.mxu0 0.0
        %507 = vmatprep.subr.mxu0 0.0
        %508 = vmatpush1.msra.mxu0 0.0
        %509 = vmatprep.subr.mxu0 0.0
        %510 = vmatpush1.msra.mxu0 0.0
        %511 = vmatprep.subr.mxu0 0.0
        %512 = vmatpush1.msra.mxu0 0.0
        %513 = vmatprep.subr.mxu0 0.0
        %514 = vmatpush1.msra.mxu0 0.0
        %515 = vmatprep.subr.mxu0 0.0
        %516 = vmatpush1.msra.mxu0 0.0
        %517 = vmatprep.subr.mxu0 0.0
        %518 = vmatpush1.msra.mxu0 0.0
        %519 = vmatprep.subr.mxu0 0.0
        %520 = vmatpush1.msra.mxu0 0.0
        %521 = vmatprep.subr.mxu0 0.0
        %522 = vmatpush1.msra.mxu0 0.0
        %523 = vmatprep.subr.mxu0 0.0
        %524 = vmatpush1.msra.mxu0 0.0
        %525 = vmatprep.subr.mxu0 0.0
        %526 = vmatpush1.msra.mxu0 0.0
        %527 = vmatprep.subr.mxu0 0.0
        %528 = vmatpush1.msra.mxu0 0.0
        %529 = vmatprep.subr.mxu0 0.0
        %530 = vmatpush1.msra.mxu0 0.0
        %531 = vmatprep.subr.mxu0 0.0
        %532 = vmatpush1.msra.mxu0 0.0
        %533 = vmatprep.subr.mxu0 0.0
        %534 = vmatpush1.msra.mxu0 0.0
        %535 = vmatprep.subr.mxu0 0.0
        %536 = vmatpush1.msra.mxu0 0.0
        %537 = vmatprep.subr.mxu0 0.0
        %538 = vmatpush1.msra.mxu0 0.0
        %539 = vmatprep.subr.mxu0 0.0
        %540 = vmatpush1.msra.mxu0 0.0
        %541 = vmatprep.subr.mxu0 0.0
        %542 = vmatpush1.msra.mxu0 0.0
        %543 = vmatprep.subr.mxu0 0.0
        %544 = vmatpush1.msra.mxu0 0.0
        %545 = vmatprep.mubr.f32.mxu0 0.0
        %546 = vmatmul.mubr.f32.gmra.mrb[0].mxu0 %v479
        %v547 = vpop.f32.mrb[0].mxu0
        %v548 = vadd.f32 0.0, %v547
        %v549 = vpop.f32.mrb[0].mxu0
        %550 = vdwg.mxu0
        %vm551 = vcmask 261120
        %v553 = vsel %vm551, %v548, 0
        %555 = vmatprep.subr.mxu0 0.0
        %556 = vmatpush1.msra.mxu0 %v451
        %557 = vmatprep.subr.mxu0 0.0
        %558 = vmatpush1.msra.mxu0 %v452
        %559 = vmatprep.subr.mxu0 0.0
        %560 = vmatpush1.msra.mxu0 %v453
        %561 = vmatprep.subr.mxu0 0.0
        %562 = vmatpush1.msra.mxu0 %v454
        %563 = vmatprep.subr.mxu0 0.0
        %564 = vmatpush1.msra.mxu0 0.0
        %565 = vmatprep.subr.mxu0 0.0
        %566 = vmatpush1.msra.mxu0 0.0
        %567 = vmatprep.subr.mxu0 0.0
        %568 = vmatpush1.msra.mxu0 0.0
        %569 = vmatprep.subr.mxu0 0.0
        %570 = vmatpush1.msra.mxu0 0.0
        %571 = vmatprep.subr.mxu0 0.0
        %572 = vmatpush1.msra.mxu0 0.0
        %573 = vmatprep.subr.mxu0 0.0
        %574 = vmatpush1.msra.mxu0 0.0
        %575 = vmatprep.subr.mxu0 0.0
        %576 = vmatpush1.msra.mxu0 0.0
        %577 = vmatprep.subr.mxu0 0.0
        %578 = vmatpush1.msra.mxu0 0.0
        %579 = vmatprep.subr.mxu0 0.0
        %580 = vmatpush1.msra.mxu0 0.0
        %581 = vmatprep.subr.mxu0 0.0
        %582 = vmatpush1.msra.mxu0 0.0
        %583 = vmatprep.subr.mxu0 0.0
        %584 = vmatpush1.msra.mxu0 0.0
        %585 = vmatprep.subr.mxu0 0.0
        %586 = vmatpush1.msra.mxu0 0.0
        %587 = vmatprep.subr.mxu0 0.0
        %588 = vmatpush1.msra.mxu0 0.0
        %589 = vmatprep.subr.mxu0 0.0
        %590 = vmatpush1.msra.mxu0 0.0
        %591 = vmatprep.subr.mxu0 0.0
        %592 = vmatpush1.msra.mxu0 0.0
        %593 = vmatprep.subr.mxu0 0.0
        %594 = vmatpush1.msra.mxu0 0.0
        %595 = vmatprep.subr.mxu0 0.0
        %596 = vmatpush1.msra.mxu0 0.0
        %597 = vmatprep.subr.mxu0 0.0
        %598 = vmatpush1.msra.mxu0 0.0
        %599 = vmatprep.subr.mxu0 0.0
        %600 = vmatpush1.msra.mxu0 0.0
        %601 = vmatprep.subr.mxu0 0.0
        %602 = vmatpush1.msra.mxu0 0.0
        %603 = vmatprep.subr.mxu0 0.0
        %604 = vmatpush1.msra.mxu0 0.0
        %605 = vmatprep.subr.mxu0 0.0
        %606 = vmatpush1.msra.mxu0 0.0
        %607 = vmatprep.subr.mxu0 0.0
        %608 = vmatpush1.msra.mxu0 0.0
        %609 = vmatprep.subr.mxu0 0.0
        %610 = vmatpush1.msra.mxu0 0.0
        %611 = vmatprep.subr.mxu0 0.0
        %612 = vmatpush1.msra.mxu0 0.0
        %613 = vmatprep.subr.mxu0 0.0
        %614 = vmatpush1.msra.mxu0 0.0
        %615 = vmatprep.subr.mxu0 0.0
        %616 = vmatpush1.msra.mxu0 0.0
        %617 = vmatprep.subr.mxu0 0.0
        %618 = vmatpush1.msra.mxu0 0.0
        %619 = vmatprep.mubr.f32.mxu0 0.0
        %620 = vmatmul.mubr.f32.gmra.mrb[0].mxu0 %v553
        %v621 = vpop.f32.mrb[0].mxu0
        %v622 = vadd.f32 0.0, %v621
        %v623 = vpop.f32.mrb[0].mxu0
        %624 = vdwg.mxu0
        %v625 = vmul.f32 %v548, %v548
        %v626 = vsel %vm551, %v625, 0.0
        %627 = vadd.xlane.f32.xlu0 %v626
        %v628 = vpop.xlane.xlu0 %627
        %v630 = vlaneseq
        %v631 = vshrl.u32 %v630, 7
        %v632 = vsub.s32 0, %v631
        %v633 = vrot.slane %v471, %v632
        %v635 = vadd.f32 %v628, %v633
        %v636 = vmul.f32 %v622, 2.0
        %v637 = vsub.f32 %v635, %v636
        %638 = vmin.xlane.f32.xlu0 %v637
        %v639 = vpop.xlane.xlu0 %638
        %vm640 = vcmp.le.f32.partialorder %v637, %v639
        %v641 = vsel %vm640, %v473, 128
        %v642 = vand.u32 %v641, 65535
        %v643 = vshra.s32 %v641, 16
        %v644 = vcvt.s32.f32 %v642
        %v645 = vcvt.s32.f32 %v643
        %646 = vmin.xlane.f32.xlu0 %v645
        %v647 = vpop.xlane.xlu0 %646
        %vm648 = vcmp.eq.f32.partialorder %v645, %v647
        %v649 = vsel %vm648, %v644, inf
        %650 = vmin.xlane.f32.xlu0 %v649
        %v651 = vpop.xlane.xlu0 %650
        %v652 = vcvt.f32.s32 %v651
        %v653 = vcvt.f32.s32 %v647
        %v654 = vshll.u32 %v653, 16
        %v655 = vadd.s32 %v654, %v652
        %vm656 = vcmp.eq.s32.totalorder %v473, %v655
        %v657 = vsel %vm656, 1, 0
        %v658 = vcvt.s32.f32 %v657
        %659 = vmatprep.subr.mxu0 0.0
        %660 = vmatpush1.msra.mxu0 %v455
        %661 = vmatprep.subr.mxu0 0.0
        %662 = vmatpush1.msra.mxu0 %v456
        %663 = vmatprep.subr.mxu0 0.0
        %664 = vmatpush1.msra.mxu0 %v457
        %665 = vmatprep.subr.mxu0 0.0
        %666 = vmatpush1.msra.mxu0 %v458
        %667 = vmatprep.subr.mxu0 0.0
        %668 = vmatpush1.msra.mxu0 %v459
        %669 = vmatprep.subr.mxu0 0.0
        %670 = vmatpush1.msra.mxu0 %v460
        %671 = vmatprep.subr.mxu0 0.0
        %672 = vmatpush1.msra.mxu0 %v461
        %673 = vmatprep.subr.mxu0 0.0
        %674 = vmatpush1.msra.mxu0 %v462
        %675 = vmatprep.subr.mxu0 0.0
        %676 = vmatpush1.msra.mxu0 %v463
        %677 = vmatprep.subr.mxu0 0.0
        %678 = vmatpush1.msra.mxu0 %v464
        %679 = vmatprep.subr.mxu0 0.0
        %680 = vmatpush1.msra.mxu0 %v465
        %681 = vmatprep.subr.mxu0 0.0
        %682 = vmatpush1.msra.mxu0 %v466
        %683 = vmatprep.subr.mxu0 0.0
        %684 = vmatpush1.msra.mxu0 %v467
        %685 = vmatprep.subr.mxu0 0.0
        %686 = vmatpush1.msra.mxu0 %v468
        %687 = vmatprep.subr.mxu0 0.0
        %688 = vmatpush1.msra.mxu0 %v469
        %689 = vmatprep.subr.mxu0 0.0
        %690 = vmatpush1.msra.mxu0 %v470
        %691 = vmatprep.subr.mxu0 0.0
        %692 = vmatpush1.msra.mxu0 0.0
        %693 = vmatprep.subr.mxu0 0.0
        %694 = vmatpush1.msra.mxu0 0.0
        %695 = vmatprep.subr.mxu0 0.0
        %696 = vmatpush1.msra.mxu0 0.0
        %697 = vmatprep.subr.mxu0 0.0
        %698 = vmatpush1.msra.mxu0 0.0
        %699 = vmatprep.subr.mxu0 0.0
        %700 = vmatpush1.msra.mxu0 0.0
        %701 = vmatprep.subr.mxu0 0.0
        %702 = vmatpush1.msra.mxu0 0.0
        %703 = vmatprep.subr.mxu0 0.0
        %704 = vmatpush1.msra.mxu0 0.0
        %705 = vmatprep.subr.mxu0 0.0
        %706 = vmatpush1.msra.mxu0 0.0
        %707 = vmatprep.subr.mxu0 0.0
        %708 = vmatpush1.msra.mxu0 0.0
        %709 = vmatprep.subr.mxu0 0.0
        %710 = vmatpush1.msra.mxu0 0.0
        %711 = vmatprep.subr.mxu0 0.0
        %712 = vmatpush1.msra.mxu0 0.0
        %713 = vmatprep.subr.mxu0 0.0
        %714 = vmatpush1.msra.mxu0 0.0
        %715 = vmatprep.subr.mxu0 0.0
        %716 = vmatpush1.msra.mxu0 0.0
        %717 = vmatprep.subr.mxu0 0.0
        %718 = vmatpush1.msra.mxu0 0.0
        %719 = vmatprep.subr.mxu0 0.0
        %720 = vmatpush1.msra.mxu0 0.0
        %721 = vmatprep.subr.mxu0 0.0
        %722 = vmatpush1.msra.mxu0 0.0
        %723 = vmatprep.mubr.f32.mxu0 0.0
        %724 = vmatmul.mubr.f32.gmra.mrb[0].mxu0 %v658
        %v725 = vpop.f32.mrb[0].mxu0
        %v726 = vadd.f32 0.0, %v725
        %v727 = vpop.f32.mrb[0].mxu0
        %728 = vdwg.mxu0
        %v729 = vld [vmem:[%s8] sm:$0xff]
        %v730 = vld [vmem:[%s8 + $0x8] sm:$0xff]
        %vm731 = vcmask 64512
        %v733 = vsel %vm731, %v729, 0
        %v736 = vsel %vm731, %v730, 0
        %738 = vmatprep.subr.mxu0 0.0
        %739 = vmatpush1.msra.mxu0 %v726
        %740 = vmatprep.subr.mxu0 0.0
        %741 = vmatpush1.msra.mxu0 0.0
        %742 = vmatprep.subr.mxu0 0.0
        %743 = vmatpush1.msra.mxu0 0.0
        %744 = vmatprep.subr.mxu0 0.0
        %745 = vmatpush1.msra.mxu0 0.0
        %746 = vmatprep.subr.mxu0 0.0
        %747 = vmatpush1.msra.mxu0 0.0
        %748 = vmatprep.subr.mxu0 0.0
        %749 = vmatpush1.msra.mxu0 0.0
        %750 = vmatprep.subr.mxu0 0.0
        %751 = vmatpush1.msra.mxu0 0.0
        %752 = vmatprep.subr.mxu0 0.0
        %753 = vmatpush1.msra.mxu0 0.0
        %754 = vmatprep.subr.mxu0 0.0
        %755 = vmatpush1.msra.mxu0 0.0
        %756 = vmatprep.subr.mxu0 0.0
        %757 = vmatpush1.msra.mxu0 0.0
        %758 = vmatprep.subr.mxu0 0.0
        %759 = vmatpush1.msra.mxu0 0.0
        %760 = vmatprep.subr.mxu0 0.0
        %761 = vmatpush1.msra.mxu0 0.0
        %762 = vmatprep.subr.mxu0 0.0
        %763 = vmatpush1.msra.mxu0 0.0
        %764 = vmatprep.subr.mxu0 0.0
        %765 = vmatpush1.msra.mxu0 0.0
        %766 = vmatprep.subr.mxu0 0.0
        %767 = vmatpush1.msra.mxu0 0.0
        %768 = vmatprep.subr.mxu0 0.0
        %769 = vmatpush1.msra.mxu0 0.0
        %770 = vmatprep.subr.mxu0 0.0
        %771 = vmatpush1.msra.mxu0 0.0
        %772 = vmatprep.subr.mxu0 0.0
        %773 = vmatpush1.msra.mxu0 0.0
        %774 = vmatprep.subr.mxu0 0.0
        %775 = vmatpush1.msra.mxu0 0.0
        %776 = vmatprep.subr.mxu0 0.0
        %777 = vmatpush1.msra.mxu0 0.0
        %778 = vmatprep.subr.mxu0 0.0
        %779 = vmatpush1.msra.mxu0 0.0
        %780 = vmatprep.subr.mxu0 0.0
        %781 = vmatpush1.msra.mxu0 0.0
        %782 = vmatprep.subr.mxu0 0.0
        %783 = vmatpush1.msra.mxu0 0.0
        %784 = vmatprep.subr.mxu0 0.0
        %785 = vmatpush1.msra.mxu0 0.0
        %786 = vmatprep.subr.mxu0 0.0
        %787 = vmatpush1.msra.mxu0 0.0
        %788 = vmatprep.subr.mxu0 0.0
        %789 = vmatpush1.msra.mxu0 0.0
        %790 = vmatprep.subr.mxu0 0.0
        %791 = vmatpush1.msra.mxu0 0.0
        %792 = vmatprep.subr.mxu0 0.0
        %793 = vmatpush1.msra.mxu0 0.0
        %794 = vmatprep.subr.mxu0 0.0
        %795 = vmatpush1.msra.mxu0 0.0
        %796 = vmatprep.subr.mxu0 0.0
        %797 = vmatpush1.msra.mxu0 0.0
        %798 = vmatprep.subr.mxu0 0.0
        %799 = vmatpush1.msra.mxu0 0.0
        %800 = vmatprep.subr.mxu0 0.0
        %801 = vmatpush1.msra.mxu0 0.0
        %802 = vmatprep.mubr.f32.mxu0 0.0
        %803 = vmatmul.mubr.f32.gmra.mrb[0].mxu0 %v733
        %v804 = vpop.f32.mrb[0].mxu0
        %v805 = vadd.f32 0.0, %v804
        %v806 = vpop.f32.mrb[0].mxu0
        %807 = vmatprep.mubr.f32.mxu0 0.0
        %808 = vmatmul.mubr.f32.gmra.mrb[0].mxu0 %v736
        %v809 = vpop.f32.mrb[0].mxu0
        %v810 = vadd.f32 0.0, %v809
        %v811 = vpop.f32.mrb[0].mxu0
        %812 = vdwg.mxu0
        %v813 = vsub.f32 %v474, %v805
        %v814 = vsub.f32 %v475, %v810
        %v815 = vmul.f32 %v813, %v813
        %v816 = vmul.f32 %v814, %v814
        %v817 = vsel %vm551, %v815, 0.0
        %v818 = vsel %vm551, %v816, 0.0
        %v819 = vadd.f32 %v817, %v818
        %820 = vadd.xlane.f32.xlu0 %v819
        %v821 = vpop.xlane.xlu0 %820
        %v822 = vrot.slane %v821, 4
        %v823 = vadd.f32 %v821, %v822
        %v824 = vrot.slane %v823, 2
        %v825 = vadd.f32 %v823, %v824
        %v826 = vrot.slane %v825, 1
        %v827 = vadd.f32 %v825, %v826
        %s828 = vtos %v827
        %s829 = sadd.f32 %s828, 0.0
        %v830 = vld [vmem:[%s5] sm:$0xff]
        %v832 = vsel %vm477, %v830, 0
        %834 = vmatprep.subr.mxu0 0.0
        %835 = vmatpush1.msra.mxu0 %v813
        %836 = vmatprep.subr.mxu0 0.0
        %837 = vmatpush1.msra.mxu0 %v814
        %838 = vmatprep.subr.mxu0 0.0
        %839 = vmatpush1.msra.mxu0 0.0
        %840 = vmatprep.subr.mxu0 0.0
        %841 = vmatpush1.msra.mxu0 0.0
        %842 = vmatprep.subr.mxu0 0.0
        %843 = vmatpush1.msra.mxu0 0.0
        %844 = vmatprep.subr.mxu0 0.0
        %845 = vmatpush1.msra.mxu0 0.0
        %846 = vmatprep.subr.mxu0 0.0
        %847 = vmatpush1.msra.mxu0 0.0
        %848 = vmatprep.subr.mxu0 0.0
        %849 = vmatpush1.msra.mxu0 0.0
        %850 = vmatprep.subr.mxu0 0.0
        %851 = vmatpush1.msra.mxu0 0.0
        %852 = vmatprep.subr.mxu0 0.0
        %853 = vmatpush1.msra.mxu0 0.0
        %854 = vmatprep.subr.mxu0 0.0
        %855 = vmatpush1.msra.mxu0 0.0
        %856 = vmatprep.subr.mxu0 0.0
        %857 = vmatpush1.msra.mxu0 0.0
        %858 = vmatprep.subr.mxu0 0.0
        %859 = vmatpush1.msra.mxu0 0.0
        %860 = vmatprep.subr.mxu0 0.0
        %861 = vmatpush1.msra.mxu0 0.0
        %862 = vmatprep.subr.mxu0 0.0
        %863 = vmatpush1.msra.mxu0 0.0
        %864 = vmatprep.subr.mxu0 0.0
        %865 = vmatpush1.msra.mxu0 0.0
        %866 = vmatprep.subr.mxu0 0.0
        %867 = vmatpush1.msra.mxu0 0.0
        %868 = vmatprep.subr.mxu0 0.0
        %869 = vmatpush1.msra.mxu0 0.0
        %870 = vmatprep.subr.mxu0 0.0
        %871 = vmatpush1.msra.mxu0 0.0
        %872 = vmatprep.subr.mxu0 0.0
        %873 = vmatpush1.msra.mxu0 0.0
        %874 = vmatprep.subr.mxu0 0.0
        %875 = vmatpush1.msra.mxu0 0.0
        %876 = vmatprep.subr.mxu0 0.0
        %877 = vmatpush1.msra.mxu0 0.0
        %878 = vmatprep.subr.mxu0 0.0
        %879 = vmatpush1.msra.mxu0 0.0
        %880 = vmatprep.subr.mxu0 0.0
        %881 = vmatpush1.msra.mxu0 0.0
        %882 = vmatprep.subr.mxu0 0.0
        %883 = vmatpush1.msra.mxu0 0.0
        %884 = vmatprep.subr.mxu0 0.0
        %885 = vmatpush1.msra.mxu0 0.0
        %886 = vmatprep.subr.mxu0 0.0
        %887 = vmatpush1.msra.mxu0 0.0
        %888 = vmatprep.subr.mxu0 0.0
        %889 = vmatpush1.msra.mxu0 0.0
        %890 = vmatprep.subr.mxu0 0.0
        %891 = vmatpush1.msra.mxu0 0.0
        %892 = vmatprep.subr.mxu0 0.0
        %893 = vmatpush1.msra.mxu0 0.0
        %894 = vmatprep.subr.mxu0 0.0
        %895 = vmatpush1.msra.mxu0 0.0
        %896 = vmatprep.subr.mxu0 0.0
        %897 = vmatpush1.msra.mxu0 0.0
        %898 = vmatprep.mubr.f32.mxu0 0.0
        %899 = vmatmul.mubr.f32.gmra.mrb[0].mxu0 %v832
        %v900 = vpop.f32.mrb[0].mxu0
        %v901 = vadd.f32 0.0, %v900
        %v902 = vpop.f32.mrb[0].mxu0
        %903 = vdwg.mxu0
        %v905 = vsel %vm551, %v901, 0
        %907 = vmatprep.subr.mxu0 0.0
        %908 = vmatpush1.msra.mxu0 %v451
        %909 = vmatprep.subr.mxu0 0.0
        %910 = vmatpush1.msra.mxu0 %v452
        %911 = vmatprep.subr.mxu0 0.0
        %912 = vmatpush1.msra.mxu0 %v453
        %913 = vmatprep.subr.mxu0 0.0
        %914 = vmatpush1.msra.mxu0 %v454
        %915 = vmatprep.subr.mxu0 0.0
        %916 = vmatpush1.msra.mxu0 0.0
        %917 = vmatprep.subr.mxu0 0.0
        %918 = vmatpush1.msra.mxu0 0.0
        %919 = vmatprep.subr.mxu0 0.0
        %920 = vmatpush1.msra.mxu0 0.0
        %921 = vmatprep.subr.mxu0 0.0
        %922 = vmatpush1.msra.mxu0 0.0
        %923 = vmatprep.subr.mxu0 0.0
        %924 = vmatpush1.msra.mxu0 0.0
        %925 = vmatprep.subr.mxu0 0.0
        %926 = vmatpush1.msra.mxu0 0.0
        %927 = vmatprep.subr.mxu0 0.0
        %928 = vmatpush1.msra.mxu0 0.0
        %929 = vmatprep.subr.mxu0 0.0
        %930 = vmatpush1.msra.mxu0 0.0
        %931 = vmatprep.subr.mxu0 0.0
        %932 = vmatpush1.msra.mxu0 0.0
        %933 = vmatprep.subr.mxu0 0.0
        %934 = vmatpush1.msra.mxu0 0.0
        %935 = vmatprep.subr.mxu0 0.0
        %936 = vmatpush1.msra.mxu0 0.0
        %937 = vmatprep.subr.mxu0 0.0
        %938 = vmatpush1.msra.mxu0 0.0
        %939 = vmatprep.subr.mxu0 0.0
        %940 = vmatpush1.msra.mxu0 0.0
        %941 = vmatprep.subr.mxu0 0.0
        %942 = vmatpush1.msra.mxu0 0.0
        %943 = vmatprep.subr.mxu0 0.0
        %944 = vmatpush1.msra.mxu0 0.0
        %945 = vmatprep.subr.mxu0 0.0
        %946 = vmatpush1.msra.mxu0 0.0
        %947 = vmatprep.subr.mxu0 0.0
        %948 = vmatpush1.msra.mxu0 0.0
        %949 = vmatprep.subr.mxu0 0.0
        %950 = vmatpush1.msra.mxu0 0.0
        %951 = vmatprep.subr.mxu0 0.0
        %952 = vmatpush1.msra.mxu0 0.0
        %953 = vmatprep.subr.mxu0 0.0
        %954 = vmatpush1.msra.mxu0 0.0
        %955 = vmatprep.subr.mxu0 0.0
        %956 = vmatpush1.msra.mxu0 0.0
        %957 = vmatprep.subr.mxu0 0.0
        %958 = vmatpush1.msra.mxu0 0.0
        %959 = vmatprep.subr.mxu0 0.0
        %960 = vmatpush1.msra.mxu0 0.0
        %961 = vmatprep.subr.mxu0 0.0
        %962 = vmatpush1.msra.mxu0 0.0
        %963 = vmatprep.subr.mxu0 0.0
        %964 = vmatpush1.msra.mxu0 0.0
        %965 = vmatprep.subr.mxu0 0.0
        %966 = vmatpush1.msra.mxu0 0.0
        %967 = vmatprep.subr.mxu0 0.0
        %968 = vmatpush1.msra.mxu0 0.0
        %969 = vmatprep.subr.mxu0 0.0
        %970 = vmatpush1.msra.mxu0 0.0
        %971 = vmatprep.mubr.f32.mxu0 0.0
        %972 = vmatmul.mubr.f32.gmra.mrb[0].mxu0 %v905
        %v973 = vpop.f32.mrb[0].mxu0
        %v974 = vadd.f32 0.0, %v973
        %v975 = vpop.f32.mrb[0].mxu0
        %976 = vdwg.mxu0
        %v977 = vmul.f32 %v901, %v901
        %v978 = vsel %vm551, %v977, 0.0
        %979 = vadd.xlane.f32.xlu0 %v978
        %v980 = vpop.xlane.xlu0 %979
        %v981 = vadd.f32 %v980, %v633
        %v982 = vmul.f32 %v974, 2.0
        %v983 = vsub.f32 %v981, %v982
        %984 = vmin.xlane.f32.xlu0 %v983
        %v985 = vpop.xlane.xlu0 %984
        %vm986 = vcmp.le.f32.partialorder %v983, %v985
        %v987 = vsel %vm986, %v473, 128
        %v988 = vand.u32 %v987, 65535
        %v989 = vshra.s32 %v987, 16
        %v990 = vcvt.s32.f32 %v988
        %v991 = vcvt.s32.f32 %v989
        %992 = vmin.xlane.f32.xlu0 %v991
        %v993 = vpop.xlane.xlu0 %992
        %vm994 = vcmp.eq.f32.partialorder %v991, %v993
        %v995 = vsel %vm994, %v990, inf
        %996 = vmin.xlane.f32.xlu0 %v995
        %v997 = vpop.xlane.xlu0 %996
        %v998 = vcvt.f32.s32 %v997
        %v999 = vcvt.f32.s32 %v993
        %v1000 = vshll.u32 %v999, 16
        %v1001 = vadd.s32 %v1000, %v998
        %vm1002 = vcmp.eq.s32.totalorder %v473, %v1001
        %v1003 = vsel %vm1002, 1, 0
        %v1004 = vcvt.s32.f32 %v1003
        %1005 = vmatprep.subr.mxu0 0.0
        %1006 = vmatpush1.msra.mxu0 %v455
        %1007 = vmatprep.subr.mxu0 0.0
        %1008 = vmatpush1.msra.mxu0 %v456
        %1009 = vmatprep.subr.mxu0 0.0
        %1010 = vmatpush1.msra.mxu0 %v457
        %1011 = vmatprep.subr.mxu0 0.0
        %1012 = vmatpush1.msra.mxu0 %v458
        %1013 = vmatprep.subr.mxu0 0.0
        %1014 = vmatpush1.msra.mxu0 %v459
        %1015 = vmatprep.subr.mxu0 0.0
        %1016 = vmatpush1.msra.mxu0 %v460
        %1017 = vmatprep.subr.mxu0 0.0
        %1018 = vmatpush1.msra.mxu0 %v461
        %1019 = vmatprep.subr.mxu0 0.0
        %1020 = vmatpush1.msra.mxu0 %v462
        %1021 = vmatprep.subr.mxu0 0.0
        %1022 = vmatpush1.msra.mxu0 %v463
        %1023 = vmatprep.subr.mxu0 0.0
        %1024 = vmatpush1.msra.mxu0 %v464
        %1025 = vmatprep.subr.mxu0 0.0
        %1026 = vmatpush1.msra.mxu0 %v465
        %1027 = vmatprep.subr.mxu0 0.0
        %1028 = vmatpush1.msra.mxu0 %v466
        %1029 = vmatprep.subr.mxu0 0.0
        %1030 = vmatpush1.msra.mxu0 %v467
        %1031 = vmatprep.subr.mxu0 0.0
        %1032 = vmatpush1.msra.mxu0 %v468
        %1033 = vmatprep.subr.mxu0 0.0
        %1034 = vmatpush1.msra.mxu0 %v469
        %1035 = vmatprep.subr.mxu0 0.0
        %1036 = vmatpush1.msra.mxu0 %v470
        %1037 = vmatprep.subr.mxu0 0.0
        %1038 = vmatpush1.msra.mxu0 0.0
        %1039 = vmatprep.subr.mxu0 0.0
        %1040 = vmatpush1.msra.mxu0 0.0
        %1041 = vmatprep.subr.mxu0 0.0
        %1042 = vmatpush1.msra.mxu0 0.0
        %1043 = vmatprep.subr.mxu0 0.0
        %1044 = vmatpush1.msra.mxu0 0.0
        %1045 = vmatprep.subr.mxu0 0.0
        %1046 = vmatpush1.msra.mxu0 0.0
        %1047 = vmatprep.subr.mxu0 0.0
        %1048 = vmatpush1.msra.mxu0 0.0
        %1049 = vmatprep.subr.mxu0 0.0
        %1050 = vmatpush1.msra.mxu0 0.0
        %1051 = vmatprep.subr.mxu0 0.0
        %1052 = vmatpush1.msra.mxu0 0.0
        %1053 = vmatprep.subr.mxu0 0.0
        %1054 = vmatpush1.msra.mxu0 0.0
        %1055 = vmatprep.subr.mxu0 0.0
        %1056 = vmatpush1.msra.mxu0 0.0
        %1057 = vmatprep.subr.mxu0 0.0
        %1058 = vmatpush1.msra.mxu0 0.0
        %1059 = vmatprep.subr.mxu0 0.0
        %1060 = vmatpush1.msra.mxu0 0.0
        %1061 = vmatprep.subr.mxu0 0.0
        %1062 = vmatpush1.msra.mxu0 0.0
        %1063 = vmatprep.subr.mxu0 0.0
        %1064 = vmatpush1.msra.mxu0 0.0
        %1065 = vmatprep.subr.mxu0 0.0
        %1066 = vmatpush1.msra.mxu0 0.0
        %1067 = vmatprep.subr.mxu0 0.0
        %1068 = vmatpush1.msra.mxu0 0.0
        %1069 = vmatprep.mubr.f32.mxu0 0.0
        %1070 = vmatmul.mubr.f32.gmra.mrb[0].mxu0 %v1004
        %v1071 = vpop.f32.mrb[0].mxu0
        %v1072 = vadd.f32 0.0, %v1071
        %v1073 = vpop.f32.mrb[0].mxu0
        %1074 = vdwg.mxu0
        %v1075 = vld [vmem:[%s9] sm:$0xff]
        %v1076 = vld [vmem:[%s9 + $0x8] sm:$0xff]
        %v1078 = vsel %vm731, %v1075, 0
        %v1081 = vsel %vm731, %v1076, 0
        %1083 = vmatprep.subr.mxu0 0.0
        %1084 = vmatpush1.msra.mxu0 %v1072
        %1085 = vmatprep.subr.mxu0 0.0
        %1086 = vmatpush1.msra.mxu0 0.0
        %1087 = vmatprep.subr.mxu0 0.0
        %1088 = vmatpush1.msra.mxu0 0.0
        %1089 = vmatprep.subr.mxu0 0.0
        %1090 = vmatpush1.msra.mxu0 0.0
        %1091 = vmatprep.subr.mxu0 0.0
        %1092 = vmatpush1.msra.mxu0 0.0
        %1093 = vmatprep.subr.mxu0 0.0
        %1094 = vmatpush1.msra.mxu0 0.0
        %1095 = vmatprep.subr.mxu0 0.0
        %1096 = vmatpush1.msra.mxu0 0.0
        %1097 = vmatprep.subr.mxu0 0.0
        %1098 = vmatpush1.msra.mxu0 0.0
        %1099 = vmatprep.subr.mxu0 0.0
        %1100 = vmatpush1.msra.mxu0 0.0
        %1101 = vmatprep.subr.mxu0 0.0
        %1102 = vmatpush1.msra.mxu0 0.0
        %1103 = vmatprep.subr.mxu0 0.0
        %1104 = vmatpush1.msra.mxu0 0.0
        %1105 = vmatprep.subr.mxu0 0.0
        %1106 = vmatpush1.msra.mxu0 0.0
        %1107 = vmatprep.subr.mxu0 0.0
        %1108 = vmatpush1.msra.mxu0 0.0
        %1109 = vmatprep.subr.mxu0 0.0
        %1110 = vmatpush1.msra.mxu0 0.0
        %1111 = vmatprep.subr.mxu0 0.0
        %1112 = vmatpush1.msra.mxu0 0.0
        %1113 = vmatprep.subr.mxu0 0.0
        %1114 = vmatpush1.msra.mxu0 0.0
        %1115 = vmatprep.subr.mxu0 0.0
        %1116 = vmatpush1.msra.mxu0 0.0
        %1117 = vmatprep.subr.mxu0 0.0
        %1118 = vmatpush1.msra.mxu0 0.0
        %1119 = vmatprep.subr.mxu0 0.0
        %1120 = vmatpush1.msra.mxu0 0.0
        %1121 = vmatprep.subr.mxu0 0.0
        %1122 = vmatpush1.msra.mxu0 0.0
        %1123 = vmatprep.subr.mxu0 0.0
        %1124 = vmatpush1.msra.mxu0 0.0
        %1125 = vmatprep.subr.mxu0 0.0
        %1126 = vmatpush1.msra.mxu0 0.0
        %1127 = vmatprep.subr.mxu0 0.0
        %1128 = vmatpush1.msra.mxu0 0.0
        %1129 = vmatprep.subr.mxu0 0.0
        %1130 = vmatpush1.msra.mxu0 0.0
        %1131 = vmatprep.subr.mxu0 0.0
        %1132 = vmatpush1.msra.mxu0 0.0
        %1133 = vmatprep.subr.mxu0 0.0
        %1134 = vmatpush1.msra.mxu0 0.0
        %1135 = vmatprep.subr.mxu0 0.0
        %1136 = vmatpush1.msra.mxu0 0.0
        %1137 = vmatprep.subr.mxu0 0.0
        %1138 = vmatpush1.msra.mxu0 0.0
        %1139 = vmatprep.subr.mxu0 0.0
        %1140 = vmatpush1.msra.mxu0 0.0
        %1141 = vmatprep.subr.mxu0 0.0
        %1142 = vmatpush1.msra.mxu0 0.0
        %1143 = vmatprep.subr.mxu0 0.0
        %1144 = vmatpush1.msra.mxu0 0.0
        %1145 = vmatprep.subr.mxu0 0.0
        %1146 = vmatpush1.msra.mxu0 0.0
        %1147 = vmatprep.mubr.f32.mxu0 0.0
        %1148 = vmatmul.mubr.f32.gmra.mrb[0].mxu0 %v1078
        %v1149 = vpop.f32.mrb[0].mxu0
        %v1150 = vadd.f32 0.0, %v1149
        %v1151 = vpop.f32.mrb[0].mxu0
        %1152 = vmatprep.mubr.f32.mxu0 0.0
        %1153 = vmatmul.mubr.f32.gmra.mrb[0].mxu0 %v1081
        %v1154 = vpop.f32.mrb[0].mxu0
        %v1155 = vadd.f32 0.0, %v1154
        %v1156 = vpop.f32.mrb[0].mxu0
        %1157 = vdwg.mxu0
        %v1158 = vsub.f32 %v813, %v1150
        %v1159 = vsub.f32 %v814, %v1155
        %v1160 = vmul.f32 %v1158, %v1158
        %v1161 = vmul.f32 %v1159, %v1159
        %v1162 = vsel %vm551, %v1160, 0.0
        %v1163 = vsel %vm551, %v1161, 0.0
        %v1164 = vadd.f32 %v1162, %v1163
        %1165 = vadd.xlane.f32.xlu0 %v1164
        %v1166 = vpop.xlane.xlu0 %1165
        %v1167 = vrot.slane %v1166, 4
        %v1168 = vadd.f32 %v1166, %v1167
        %v1169 = vrot.slane %v1168, 2
        %v1170 = vadd.f32 %v1168, %v1169
        %v1171 = vrot.slane %v1170, 1
        %v1172 = vadd.f32 %v1170, %v1171
        %s1173 = vtos %v1172
        %s1174 = sadd.f32 %s829, %s1173
        %v1175 = vld [vmem:[%s6] sm:$0xff]
        %v1177 = vsel %vm477, %v1175, 0
        %1179 = vmatprep.subr.mxu0 0.0
        %1180 = vmatpush1.msra.mxu0 %v1158
        %1181 = vmatprep.subr.mxu0 0.0
        %1182 = vmatpush1.msra.mxu0 %v1159
        %1183 = vmatprep.subr.mxu0 0.0
        %1184 = vmatpush1.msra.mxu0 0.0
        %1185 = vmatprep.subr.mxu0 0.0
        %1186 = vmatpush1.msra.mxu0 0.0
        %1187 = vmatprep.subr.mxu0 0.0
        %1188 = vmatpush1.msra.mxu0 0.0
        %1189 = vmatprep.subr.mxu0 0.0
        %1190 = vmatpush1.msra.mxu0 0.0
        %1191 = vmatprep.subr.mxu0 0.0
        %1192 = vmatpush1.msra.mxu0 0.0
        %1193 = vmatprep.subr.mxu0 0.0
        %1194 = vmatpush1.msra.mxu0 0.0
        %1195 = vmatprep.subr.mxu0 0.0
        %1196 = vmatpush1.msra.mxu0 0.0
        %1197 = vmatprep.subr.mxu0 0.0
        %1198 = vmatpush1.msra.mxu0 0.0
        %1199 = vmatprep.subr.mxu0 0.0
        %1200 = vmatpush1.msra.mxu0 0.0
        %1201 = vmatprep.subr.mxu0 0.0
        %1202 = vmatpush1.msra.mxu0 0.0
        %1203 = vmatprep.subr.mxu0 0.0
        %1204 = vmatpush1.msra.mxu0 0.0
        %1205 = vmatprep.subr.mxu0 0.0
        %1206 = vmatpush1.msra.mxu0 0.0
        %1207 = vmatprep.subr.mxu0 0.0
        %1208 = vmatpush1.msra.mxu0 0.0
        %1209 = vmatprep.subr.mxu0 0.0
        %1210 = vmatpush1.msra.mxu0 0.0
        %1211 = vmatprep.subr.mxu0 0.0
        %1212 = vmatpush1.msra.mxu0 0.0
        %1213 = vmatprep.subr.mxu0 0.0
        %1214 = vmatpush1.msra.mxu0 0.0
        %1215 = vmatprep.subr.mxu0 0.0
        %1216 = vmatpush1.msra.mxu0 0.0
        %1217 = vmatprep.subr.mxu0 0.0
        %1218 = vmatpush1.msra.mxu0 0.0
        %1219 = vmatprep.subr.mxu0 0.0
        %1220 = vmatpush1.msra.mxu0 0.0
        %1221 = vmatprep.subr.mxu0 0.0
        %1222 = vmatpush1.msra.mxu0 0.0
        %1223 = vmatprep.subr.mxu0 0.0
        %1224 = vmatpush1.msra.mxu0 0.0
        %1225 = vmatprep.subr.mxu0 0.0
        %1226 = vmatpush1.msra.mxu0 0.0
        %1227 = vmatprep.subr.mxu0 0.0
        %1228 = vmatpush1.msra.mxu0 0.0
        %1229 = vmatprep.subr.mxu0 0.0
        %1230 = vmatpush1.msra.mxu0 0.0
        %1231 = vmatprep.subr.mxu0 0.0
        %1232 = vmatpush1.msra.mxu0 0.0
        %1233 = vmatprep.subr.mxu0 0.0
        %1234 = vmatpush1.msra.mxu0 0.0
        %1235 = vmatprep.subr.mxu0 0.0
        %1236 = vmatpush1.msra.mxu0 0.0
        %1237 = vmatprep.subr.mxu0 0.0
        %1238 = vmatpush1.msra.mxu0 0.0
        %1239 = vmatprep.subr.mxu0 0.0
        %1240 = vmatpush1.msra.mxu0 0.0
        %1241 = vmatprep.subr.mxu0 0.0
        %1242 = vmatpush1.msra.mxu0 0.0
        %1243 = vmatprep.mubr.f32.mxu0 0.0
        %1244 = vmatmul.mubr.f32.gmra.mrb[0].mxu0 %v1177
        %v1245 = vpop.f32.mrb[0].mxu0
        %v1246 = vadd.f32 0.0, %v1245
        %v1247 = vpop.f32.mrb[0].mxu0
        %1248 = vdwg.mxu0
        %v1250 = vsel %vm551, %v1246, 0
        %1252 = vmatprep.subr.mxu0 0.0
        %1253 = vmatpush1.msra.mxu0 %v451
        %1254 = vmatprep.subr.mxu0 0.0
        %1255 = vmatpush1.msra.mxu0 %v452
        %1256 = vmatprep.subr.mxu0 0.0
        %1257 = vmatpush1.msra.mxu0 %v453
        %1258 = vmatprep.subr.mxu0 0.0
        %1259 = vmatpush1.msra.mxu0 %v454
        %1260 = vmatprep.subr.mxu0 0.0
        %1261 = vmatpush1.msra.mxu0 0.0
        %1262 = vmatprep.subr.mxu0 0.0
        %1263 = vmatpush1.msra.mxu0 0.0
        %1264 = vmatprep.subr.mxu0 0.0
        %1265 = vmatpush1.msra.mxu0 0.0
        %1266 = vmatprep.subr.mxu0 0.0
        %1267 = vmatpush1.msra.mxu0 0.0
        %1268 = vmatprep.subr.mxu0 0.0
        %1269 = vmatpush1.msra.mxu0 0.0
        %1270 = vmatprep.subr.mxu0 0.0
        %1271 = vmatpush1.msra.mxu0 0.0
        %1272 = vmatprep.subr.mxu0 0.0
        %1273 = vmatpush1.msra.mxu0 0.0
        %1274 = vmatprep.subr.mxu0 0.0
        %1275 = vmatpush1.msra.mxu0 0.0
        %1276 = vmatprep.subr.mxu0 0.0
        %1277 = vmatpush1.msra.mxu0 0.0
        %1278 = vmatprep.subr.mxu0 0.0
        %1279 = vmatpush1.msra.mxu0 0.0
        %1280 = vmatprep.subr.mxu0 0.0
        %1281 = vmatpush1.msra.mxu0 0.0
        %1282 = vmatprep.subr.mxu0 0.0
        %1283 = vmatpush1.msra.mxu0 0.0
        %1284 = vmatprep.subr.mxu0 0.0
        %1285 = vmatpush1.msra.mxu0 0.0
        %1286 = vmatprep.subr.mxu0 0.0
        %1287 = vmatpush1.msra.mxu0 0.0
        %1288 = vmatprep.subr.mxu0 0.0
        %1289 = vmatpush1.msra.mxu0 0.0
        %1290 = vmatprep.subr.mxu0 0.0
        %1291 = vmatpush1.msra.mxu0 0.0
        %1292 = vmatprep.subr.mxu0 0.0
        %1293 = vmatpush1.msra.mxu0 0.0
        %1294 = vmatprep.subr.mxu0 0.0
        %1295 = vmatpush1.msra.mxu0 0.0
        %1296 = vmatprep.subr.mxu0 0.0
        %1297 = vmatpush1.msra.mxu0 0.0
        %1298 = vmatprep.subr.mxu0 0.0
        %1299 = vmatpush1.msra.mxu0 0.0
        %1300 = vmatprep.subr.mxu0 0.0
        %1301 = vmatpush1.msra.mxu0 0.0
        %1302 = vmatprep.subr.mxu0 0.0
        %1303 = vmatpush1.msra.mxu0 0.0
        %1304 = vmatprep.subr.mxu0 0.0
        %1305 = vmatpush1.msra.mxu0 0.0
        %1306 = vmatprep.subr.mxu0 0.0
        %1307 = vmatpush1.msra.mxu0 0.0
        %1308 = vmatprep.subr.mxu0 0.0
        %1309 = vmatpush1.msra.mxu0 0.0
        %1310 = vmatprep.subr.mxu0 0.0
        %1311 = vmatpush1.msra.mxu0 0.0
        %1312 = vmatprep.subr.mxu0 0.0
        %1313 = vmatpush1.msra.mxu0 0.0
        %1314 = vmatprep.subr.mxu0 0.0
        %1315 = vmatpush1.msra.mxu0 0.0
        %1316 = vmatprep.mubr.f32.mxu0 0.0
        %1317 = vmatmul.mubr.f32.gmra.mrb[0].mxu0 %v1250
        %v1318 = vpop.f32.mrb[0].mxu0
        %v1319 = vadd.f32 0.0, %v1318
        %v1320 = vpop.f32.mrb[0].mxu0
        %1321 = vdwg.mxu0
        %v1322 = vmul.f32 %v1246, %v1246
        %v1323 = vsel %vm551, %v1322, 0.0
        %1324 = vadd.xlane.f32.xlu0 %v1323
        %v1325 = vpop.xlane.xlu0 %1324
        %v1326 = vadd.f32 %v1325, %v633
        %v1327 = vmul.f32 %v1319, 2.0
        %v1328 = vsub.f32 %v1326, %v1327
        %1329 = vmin.xlane.f32.xlu0 %v1328
        %v1330 = vpop.xlane.xlu0 %1329
        %vm1331 = vcmp.le.f32.partialorder %v1328, %v1330
        %v1332 = vsel %vm1331, %v473, 128
        %v1333 = vand.u32 %v1332, 65535
        %v1334 = vshra.s32 %v1332, 16
        %v1335 = vcvt.s32.f32 %v1333
        %v1336 = vcvt.s32.f32 %v1334
        %1337 = vmin.xlane.f32.xlu0 %v1336
        %v1338 = vpop.xlane.xlu0 %1337
        %vm1339 = vcmp.eq.f32.partialorder %v1336, %v1338
        %v1340 = vsel %vm1339, %v1335, inf
        %1341 = vmin.xlane.f32.xlu0 %v1340
        %v1342 = vpop.xlane.xlu0 %1341
        %v1343 = vcvt.f32.s32 %v1342
        %v1344 = vcvt.f32.s32 %v1338
        %v1345 = vshll.u32 %v1344, 16
        %v1346 = vadd.s32 %v1345, %v1343
        %vm1347 = vcmp.eq.s32.totalorder %v473, %v1346
        %v1348 = vsel %vm1347, 1, 0
        %v1349 = vcvt.s32.f32 %v1348
        %1350 = vmatprep.subr.mxu0 0.0
        %1351 = vmatpush1.msra.mxu0 %v455
        %1352 = vmatprep.subr.mxu0 0.0
        %1353 = vmatpush1.msra.mxu0 %v456
        %1354 = vmatprep.subr.mxu0 0.0
        %1355 = vmatpush1.msra.mxu0 %v457
        %1356 = vmatprep.subr.mxu0 0.0
        %1357 = vmatpush1.msra.mxu0 %v458
        %1358 = vmatprep.subr.mxu0 0.0
        %1359 = vmatpush1.msra.mxu0 %v459
        %1360 = vmatprep.subr.mxu0 0.0
        %1361 = vmatpush1.msra.mxu0 %v460
        %1362 = vmatprep.subr.mxu0 0.0
        %1363 = vmatpush1.msra.mxu0 %v461
        %1364 = vmatprep.subr.mxu0 0.0
        %1365 = vmatpush1.msra.mxu0 %v462
        %1366 = vmatprep.subr.mxu0 0.0
        %1367 = vmatpush1.msra.mxu0 %v463
        %1368 = vmatprep.subr.mxu0 0.0
        %1369 = vmatpush1.msra.mxu0 %v464
        %1370 = vmatprep.subr.mxu0 0.0
        %1371 = vmatpush1.msra.mxu0 %v465
        %1372 = vmatprep.subr.mxu0 0.0
        %1373 = vmatpush1.msra.mxu0 %v466
        %1374 = vmatprep.subr.mxu0 0.0
        %1375 = vmatpush1.msra.mxu0 %v467
        %1376 = vmatprep.subr.mxu0 0.0
        %1377 = vmatpush1.msra.mxu0 %v468
        %1378 = vmatprep.subr.mxu0 0.0
        %1379 = vmatpush1.msra.mxu0 %v469
        %1380 = vmatprep.subr.mxu0 0.0
        %1381 = vmatpush1.msra.mxu0 %v470
        %1382 = vmatprep.subr.mxu0 0.0
        %1383 = vmatpush1.msra.mxu0 0.0
        %1384 = vmatprep.subr.mxu0 0.0
        %1385 = vmatpush1.msra.mxu0 0.0
        %1386 = vmatprep.subr.mxu0 0.0
        %1387 = vmatpush1.msra.mxu0 0.0
        %1388 = vmatprep.subr.mxu0 0.0
        %1389 = vmatpush1.msra.mxu0 0.0
        %1390 = vmatprep.subr.mxu0 0.0
        %1391 = vmatpush1.msra.mxu0 0.0
        %1392 = vmatprep.subr.mxu0 0.0
        %1393 = vmatpush1.msra.mxu0 0.0
        %1394 = vmatprep.subr.mxu0 0.0
        %1395 = vmatpush1.msra.mxu0 0.0
        %1396 = vmatprep.subr.mxu0 0.0
        %1397 = vmatpush1.msra.mxu0 0.0
        %1398 = vmatprep.subr.mxu0 0.0
        %1399 = vmatpush1.msra.mxu0 0.0
        %1400 = vmatprep.subr.mxu0 0.0
        %1401 = vmatpush1.msra.mxu0 0.0
        %1402 = vmatprep.subr.mxu0 0.0
        %1403 = vmatpush1.msra.mxu0 0.0
        %1404 = vmatprep.subr.mxu0 0.0
        %1405 = vmatpush1.msra.mxu0 0.0
        %1406 = vmatprep.subr.mxu0 0.0
        %1407 = vmatpush1.msra.mxu0 0.0
        %1408 = vmatprep.subr.mxu0 0.0
        %1409 = vmatpush1.msra.mxu0 0.0
        %1410 = vmatprep.subr.mxu0 0.0
        %1411 = vmatpush1.msra.mxu0 0.0
        %1412 = vmatprep.subr.mxu0 0.0
        %1413 = vmatpush1.msra.mxu0 0.0
        %1414 = vmatprep.mubr.f32.mxu0 0.0
        %1415 = vmatmul.mubr.f32.gmra.mrb[0].mxu0 %v1349
        %v1416 = vpop.f32.mrb[0].mxu0
        %v1417 = vadd.f32 0.0, %v1416
        %v1418 = vpop.f32.mrb[0].mxu0
        %1419 = vdwg.mxu0
        %v1420 = vld [vmem:[%s10] sm:$0xff]
        %v1421 = vld [vmem:[%s10 + $0x8] sm:$0xff]
        %v1423 = vsel %vm731, %v1420, 0
        %v1426 = vsel %vm731, %v1421, 0
        %1428 = vmatprep.subr.mxu0 0.0
        %1429 = vmatpush1.msra.mxu0 %v1417
        %1430 = vmatprep.subr.mxu0 0.0
        %1431 = vmatpush1.msra.mxu0 0.0
        %1432 = vmatprep.subr.mxu0 0.0
        %1433 = vmatpush1.msra.mxu0 0.0
        %1434 = vmatprep.subr.mxu0 0.0
        %1435 = vmatpush1.msra.mxu0 0.0
        %1436 = vmatprep.subr.mxu0 0.0
        %1437 = vmatpush1.msra.mxu0 0.0
        %1438 = vmatprep.subr.mxu0 0.0
        %1439 = vmatpush1.msra.mxu0 0.0
        %1440 = vmatprep.subr.mxu0 0.0
        %1441 = vmatpush1.msra.mxu0 0.0
        %1442 = vmatprep.subr.mxu0 0.0
        %1443 = vmatpush1.msra.mxu0 0.0
        %1444 = vmatprep.subr.mxu0 0.0
        %1445 = vmatpush1.msra.mxu0 0.0
        %1446 = vmatprep.subr.mxu0 0.0
        %1447 = vmatpush1.msra.mxu0 0.0
        %1448 = vmatprep.subr.mxu0 0.0
        %1449 = vmatpush1.msra.mxu0 0.0
        %1450 = vmatprep.subr.mxu0 0.0
        %1451 = vmatpush1.msra.mxu0 0.0
        %1452 = vmatprep.subr.mxu0 0.0
        %1453 = vmatpush1.msra.mxu0 0.0
        %1454 = vmatprep.subr.mxu0 0.0
        %1455 = vmatpush1.msra.mxu0 0.0
        %1456 = vmatprep.subr.mxu0 0.0
        %1457 = vmatpush1.msra.mxu0 0.0
        %1458 = vmatprep.subr.mxu0 0.0
        %1459 = vmatpush1.msra.mxu0 0.0
        %1460 = vmatprep.subr.mxu0 0.0
        %1461 = vmatpush1.msra.mxu0 0.0
        %1462 = vmatprep.subr.mxu0 0.0
        %1463 = vmatpush1.msra.mxu0 0.0
        %1464 = vmatprep.subr.mxu0 0.0
        %1465 = vmatpush1.msra.mxu0 0.0
        %1466 = vmatprep.subr.mxu0 0.0
        %1467 = vmatpush1.msra.mxu0 0.0
        %1468 = vmatprep.subr.mxu0 0.0
        %1469 = vmatpush1.msra.mxu0 0.0
        %1470 = vmatprep.subr.mxu0 0.0
        %1471 = vmatpush1.msra.mxu0 0.0
        %1472 = vmatprep.subr.mxu0 0.0
        %1473 = vmatpush1.msra.mxu0 0.0
        %1474 = vmatprep.subr.mxu0 0.0
        %1475 = vmatpush1.msra.mxu0 0.0
        %1476 = vmatprep.subr.mxu0 0.0
        %1477 = vmatpush1.msra.mxu0 0.0
        %1478 = vmatprep.subr.mxu0 0.0
        %1479 = vmatpush1.msra.mxu0 0.0
        %1480 = vmatprep.subr.mxu0 0.0
        %1481 = vmatpush1.msra.mxu0 0.0
        %1482 = vmatprep.subr.mxu0 0.0
        %1483 = vmatpush1.msra.mxu0 0.0
        %1484 = vmatprep.subr.mxu0 0.0
        %1485 = vmatpush1.msra.mxu0 0.0
        %1486 = vmatprep.subr.mxu0 0.0
        %1487 = vmatpush1.msra.mxu0 0.0
        %1488 = vmatprep.subr.mxu0 0.0
        %1489 = vmatpush1.msra.mxu0 0.0
        %1490 = vmatprep.subr.mxu0 0.0
        %1491 = vmatpush1.msra.mxu0 0.0
        %1492 = vmatprep.mubr.f32.mxu0 0.0
        %1493 = vmatmul.mubr.f32.gmra.mrb[0].mxu0 %v1423
        %v1494 = vpop.f32.mrb[0].mxu0
        %v1495 = vadd.f32 0.0, %v1494
        %v1496 = vpop.f32.mrb[0].mxu0
        %1497 = vmatprep.mubr.f32.mxu0 0.0
        %1498 = vmatmul.mubr.f32.gmra.mrb[0].mxu0 %v1426
        %v1499 = vpop.f32.mrb[0].mxu0
        %v1500 = vadd.f32 0.0, %v1499
        %v1501 = vpop.f32.mrb[0].mxu0
        %1502 = vdwg.mxu0
        %v1503 = vsub.f32 %v1158, %v1495
        %v1504 = vsub.f32 %v1159, %v1500
        %v1505 = vmul.f32 %v1503, %v1503
        %v1506 = vmul.f32 %v1504, %v1504
        %v1507 = vsel %vm551, %v1505, 0.0
        %v1508 = vsel %vm551, %v1506, 0.0
        %v1509 = vadd.f32 %v1507, %v1508
        %1510 = vadd.xlane.f32.xlu0 %v1509
        %v1511 = vpop.xlane.xlu0 %1510
        %v1512 = vrot.slane %v1511, 4
        %v1513 = vadd.f32 %v1511, %v1512
        %v1514 = vrot.slane %v1513, 2
        %v1515 = vadd.f32 %v1513, %v1514
        %v1516 = vrot.slane %v1515, 1
        %v1517 = vadd.f32 %v1515, %v1516
        %s1518 = vtos %v1517
        %s1519 = sadd.f32 %s1174, %s1518
        %v1520 = vld [vmem:[%s7] sm:$0xff]
        %v1522 = vsel %vm477, %v1520, 0
        %1524 = vmatprep.subr.mxu0 0.0
        %1525 = vmatpush1.msra.mxu0 %v1503
        %1526 = vmatprep.subr.mxu0 0.0
        %1527 = vmatpush1.msra.mxu0 %v1504
        %1528 = vmatprep.subr.mxu0 0.0
        %1529 = vmatpush1.msra.mxu0 0.0
        %1530 = vmatprep.subr.mxu0 0.0
        %1531 = vmatpush1.msra.mxu0 0.0
        %1532 = vmatprep.subr.mxu0 0.0
        %1533 = vmatpush1.msra.mxu0 0.0
        %1534 = vmatprep.subr.mxu0 0.0
        %1535 = vmatpush1.msra.mxu0 0.0
        %1536 = vmatprep.subr.mxu0 0.0
        %1537 = vmatpush1.msra.mxu0 0.0
        %1538 = vmatprep.subr.mxu0 0.0
        %1539 = vmatpush1.msra.mxu0 0.0
        %1540 = vmatprep.subr.mxu0 0.0
        %1541 = vmatpush1.msra.mxu0 0.0
        %1542 = vmatprep.subr.mxu0 0.0
        %1543 = vmatpush1.msra.mxu0 0.0
        %1544 = vmatprep.subr.mxu0 0.0
        %1545 = vmatpush1.msra.mxu0 0.0
        %1546 = vmatprep.subr.mxu0 0.0
        %1547 = vmatpush1.msra.mxu0 0.0
        %1548 = vmatprep.subr.mxu0 0.0
        %1549 = vmatpush1.msra.mxu0 0.0
        %1550 = vmatprep.subr.mxu0 0.0
        %1551 = vmatpush1.msra.mxu0 0.0
        %1552 = vmatprep.subr.mxu0 0.0
        %1553 = vmatpush1.msra.mxu0 0.0
        %1554 = vmatprep.subr.mxu0 0.0
        %1555 = vmatpush1.msra.mxu0 0.0
        %1556 = vmatprep.subr.mxu0 0.0
        %1557 = vmatpush1.msra.mxu0 0.0
        %1558 = vmatprep.subr.mxu0 0.0
        %1559 = vmatpush1.msra.mxu0 0.0
        %1560 = vmatprep.subr.mxu0 0.0
        %1561 = vmatpush1.msra.mxu0 0.0
        %1562 = vmatprep.subr.mxu0 0.0
        %1563 = vmatpush1.msra.mxu0 0.0
        %1564 = vmatprep.subr.mxu0 0.0
        %1565 = vmatpush1.msra.mxu0 0.0
        %1566 = vmatprep.subr.mxu0 0.0
        %1567 = vmatpush1.msra.mxu0 0.0
        %1568 = vmatprep.subr.mxu0 0.0
        %1569 = vmatpush1.msra.mxu0 0.0
        %1570 = vmatprep.subr.mxu0 0.0
        %1571 = vmatpush1.msra.mxu0 0.0
        %1572 = vmatprep.subr.mxu0 0.0
        %1573 = vmatpush1.msra.mxu0 0.0
        %1574 = vmatprep.subr.mxu0 0.0
        %1575 = vmatpush1.msra.mxu0 0.0
        %1576 = vmatprep.subr.mxu0 0.0
        %1577 = vmatpush1.msra.mxu0 0.0
        %1578 = vmatprep.subr.mxu0 0.0
        %1579 = vmatpush1.msra.mxu0 0.0
        %1580 = vmatprep.subr.mxu0 0.0
        %1581 = vmatpush1.msra.mxu0 0.0
        %1582 = vmatprep.subr.mxu0 0.0
        %1583 = vmatpush1.msra.mxu0 0.0
        %1584 = vmatprep.subr.mxu0 0.0
        %1585 = vmatpush1.msra.mxu0 0.0
        %1586 = vmatprep.subr.mxu0 0.0
        %1587 = vmatpush1.msra.mxu0 0.0
        %1588 = vmatprep.mubr.f32.mxu0 0.0
        %1589 = vmatmul.mubr.f32.gmra.mrb[0].mxu0 %v1522
        %v1590 = vpop.f32.mrb[0].mxu0
        %v1591 = vadd.f32 0.0, %v1590
        %v1592 = vpop.f32.mrb[0].mxu0
        %1593 = vdwg.mxu0
        %v1595 = vsel %vm551, %v1591, 0
        %1597 = vmatprep.subr.mxu0 0.0
        %1598 = vmatpush1.msra.mxu0 %v451
        %1599 = vmatprep.subr.mxu0 0.0
        %1600 = vmatpush1.msra.mxu0 %v452
        %1601 = vmatprep.subr.mxu0 0.0
        %1602 = vmatpush1.msra.mxu0 %v453
        %1603 = vmatprep.subr.mxu0 0.0
        %1604 = vmatpush1.msra.mxu0 %v454
        %1605 = vmatprep.subr.mxu0 0.0
        %1606 = vmatpush1.msra.mxu0 0.0
        %1607 = vmatprep.subr.mxu0 0.0
        %1608 = vmatpush1.msra.mxu0 0.0
        %1609 = vmatprep.subr.mxu0 0.0
        %1610 = vmatpush1.msra.mxu0 0.0
        %1611 = vmatprep.subr.mxu0 0.0
        %1612 = vmatpush1.msra.mxu0 0.0
        %1613 = vmatprep.subr.mxu0 0.0
        %1614 = vmatpush1.msra.mxu0 0.0
        %1615 = vmatprep.subr.mxu0 0.0
        %1616 = vmatpush1.msra.mxu0 0.0
        %1617 = vmatprep.subr.mxu0 0.0
        %1618 = vmatpush1.msra.mxu0 0.0
        %1619 = vmatprep.subr.mxu0 0.0
        %1620 = vmatpush1.msra.mxu0 0.0
        %1621 = vmatprep.subr.mxu0 0.0
        %1622 = vmatpush1.msra.mxu0 0.0
        %1623 = vmatprep.subr.mxu0 0.0
        %1624 = vmatpush1.msra.mxu0 0.0
        %1625 = vmatprep.subr.mxu0 0.0
        %1626 = vmatpush1.msra.mxu0 0.0
        %1627 = vmatprep.subr.mxu0 0.0
        %1628 = vmatpush1.msra.mxu0 0.0
        %1629 = vmatprep.subr.mxu0 0.0
        %1630 = vmatpush1.msra.mxu0 0.0
        %1631 = vmatprep.subr.mxu0 0.0
        %1632 = vmatpush1.msra.mxu0 0.0
        %1633 = vmatprep.subr.mxu0 0.0
        %1634 = vmatpush1.msra.mxu0 0.0
        %1635 = vmatprep.subr.mxu0 0.0
        %1636 = vmatpush1.msra.mxu0 0.0
        %1637 = vmatprep.subr.mxu0 0.0
        %1638 = vmatpush1.msra.mxu0 0.0
        %1639 = vmatprep.subr.mxu0 0.0
        %1640 = vmatpush1.msra.mxu0 0.0
        %1641 = vmatprep.subr.mxu0 0.0
        %1642 = vmatpush1.msra.mxu0 0.0
        %1643 = vmatprep.subr.mxu0 0.0
        %1644 = vmatpush1.msra.mxu0 0.0
        %1645 = vmatprep.subr.mxu0 0.0
        %1646 = vmatpush1.msra.mxu0 0.0
        %1647 = vmatprep.subr.mxu0 0.0
        %1648 = vmatpush1.msra.mxu0 0.0
        %1649 = vmatprep.subr.mxu0 0.0
        %1650 = vmatpush1.msra.mxu0 0.0
        %1651 = vmatprep.subr.mxu0 0.0
        %1652 = vmatpush1.msra.mxu0 0.0
        %1653 = vmatprep.subr.mxu0 0.0
        %1654 = vmatpush1.msra.mxu0 0.0
        %1655 = vmatprep.subr.mxu0 0.0
        %1656 = vmatpush1.msra.mxu0 0.0
        %1657 = vmatprep.subr.mxu0 0.0
        %1658 = vmatpush1.msra.mxu0 0.0
        %1659 = vmatprep.subr.mxu0 0.0
        %1660 = vmatpush1.msra.mxu0 0.0
        %1661 = vmatprep.mubr.f32.mxu0 0.0
        %1662 = vmatmul.mubr.f32.gmra.mrb[0].mxu0 %v1595
        %v1663 = vpop.f32.mrb[0].mxu0
        %v1664 = vadd.f32 0.0, %v1663
        %v1665 = vpop.f32.mrb[0].mxu0
        %1666 = vdwg.mxu0
        %v1667 = vmul.f32 %v1591, %v1591
        %v1668 = vsel %vm551, %v1667, 0.0
        %1669 = vadd.xlane.f32.xlu0 %v1668
        %v1670 = vpop.xlane.xlu0 %1669
        %v1671 = vadd.f32 %v1670, %v633
        %v1672 = vmul.f32 %v1664, 2.0
        %v1673 = vsub.f32 %v1671, %v1672
        %1674 = vmin.xlane.f32.xlu0 %v1673
        %v1675 = vpop.xlane.xlu0 %1674
        %vm1676 = vcmp.le.f32.partialorder %v1673, %v1675
        %v1677 = vsel %vm1676, %v473, 128
        %v1678 = vand.u32 %v1677, 65535
        %v1679 = vshra.s32 %v1677, 16
        %v1680 = vcvt.s32.f32 %v1678
        %v1681 = vcvt.s32.f32 %v1679
        %1682 = vmin.xlane.f32.xlu0 %v1681
        %v1683 = vpop.xlane.xlu0 %1682
        %vm1684 = vcmp.eq.f32.partialorder %v1681, %v1683
        %v1685 = vsel %vm1684, %v1680, inf
        %1686 = vmin.xlane.f32.xlu0 %v1685
        %v1687 = vpop.xlane.xlu0 %1686
        %v1688 = vcvt.f32.s32 %v1687
        %v1689 = vcvt.f32.s32 %v1683
        %v1690 = vshll.u32 %v1689, 16
        %v1691 = vadd.s32 %v1690, %v1688
        %vm1692 = vcmp.eq.s32.totalorder %v473, %v1691
        %v1693 = vsel %vm1692, 1, 0
        %v1694 = vcvt.s32.f32 %v1693
        %1695 = vmatprep.subr.mxu0 0.0
        %1696 = vmatpush1.msra.mxu0 %v455
        %1697 = vmatprep.subr.mxu0 0.0
        %1698 = vmatpush1.msra.mxu0 %v456
        %1699 = vmatprep.subr.mxu0 0.0
        %1700 = vmatpush1.msra.mxu0 %v457
        %1701 = vmatprep.subr.mxu0 0.0
        %1702 = vmatpush1.msra.mxu0 %v458
        %1703 = vmatprep.subr.mxu0 0.0
        %1704 = vmatpush1.msra.mxu0 %v459
        %1705 = vmatprep.subr.mxu0 0.0
        %1706 = vmatpush1.msra.mxu0 %v460
        %1707 = vmatprep.subr.mxu0 0.0
        %1708 = vmatpush1.msra.mxu0 %v461
        %1709 = vmatprep.subr.mxu0 0.0
        %1710 = vmatpush1.msra.mxu0 %v462
        %1711 = vmatprep.subr.mxu0 0.0
        %1712 = vmatpush1.msra.mxu0 %v463
        %1713 = vmatprep.subr.mxu0 0.0
        %1714 = vmatpush1.msra.mxu0 %v464
        %1715 = vmatprep.subr.mxu0 0.0
        %1716 = vmatpush1.msra.mxu0 %v465
        %1717 = vmatprep.subr.mxu0 0.0
        %1718 = vmatpush1.msra.mxu0 %v466
        %1719 = vmatprep.subr.mxu0 0.0
        %1720 = vmatpush1.msra.mxu0 %v467
        %1721 = vmatprep.subr.mxu0 0.0
        %1722 = vmatpush1.msra.mxu0 %v468
        %1723 = vmatprep.subr.mxu0 0.0
        %1724 = vmatpush1.msra.mxu0 %v469
        %1725 = vmatprep.subr.mxu0 0.0
        %1726 = vmatpush1.msra.mxu0 %v470
        %1727 = vmatprep.subr.mxu0 0.0
        %1728 = vmatpush1.msra.mxu0 0.0
        %1729 = vmatprep.subr.mxu0 0.0
        %1730 = vmatpush1.msra.mxu0 0.0
        %1731 = vmatprep.subr.mxu0 0.0
        %1732 = vmatpush1.msra.mxu0 0.0
        %1733 = vmatprep.subr.mxu0 0.0
        %1734 = vmatpush1.msra.mxu0 0.0
        %1735 = vmatprep.subr.mxu0 0.0
        %1736 = vmatpush1.msra.mxu0 0.0
        %1737 = vmatprep.subr.mxu0 0.0
        %1738 = vmatpush1.msra.mxu0 0.0
        %1739 = vmatprep.subr.mxu0 0.0
        %1740 = vmatpush1.msra.mxu0 0.0
        %1741 = vmatprep.subr.mxu0 0.0
        %1742 = vmatpush1.msra.mxu0 0.0
        %1743 = vmatprep.subr.mxu0 0.0
        %1744 = vmatpush1.msra.mxu0 0.0
        %1745 = vmatprep.subr.mxu0 0.0
        %1746 = vmatpush1.msra.mxu0 0.0
        %1747 = vmatprep.subr.mxu0 0.0
        %1748 = vmatpush1.msra.mxu0 0.0
        %1749 = vmatprep.subr.mxu0 0.0
        %1750 = vmatpush1.msra.mxu0 0.0
        %1751 = vmatprep.subr.mxu0 0.0
        %1752 = vmatpush1.msra.mxu0 0.0
        %1753 = vmatprep.subr.mxu0 0.0
        %1754 = vmatpush1.msra.mxu0 0.0
        %1755 = vmatprep.subr.mxu0 0.0
        %1756 = vmatpush1.msra.mxu0 0.0
        %1757 = vmatprep.subr.mxu0 0.0
        %1758 = vmatpush1.msra.mxu0 0.0
        %1759 = vmatprep.mubr.f32.mxu0 0.0
        %1760 = vmatmul.mubr.f32.gmra.mrb[0].mxu0 %v1694
        %v1761 = vpop.f32.mrb[0].mxu0
        %v1762 = vadd.f32 0.0, %v1761
        %v1763 = vpop.f32.mrb[0].mxu0
        %1764 = vdwg.mxu0
        %v1765 = vld [vmem:[%s11] sm:$0xff]
        %v1766 = vld [vmem:[%s11 + $0x8] sm:$0xff]
        %v1768 = vsel %vm731, %v1765, 0
        %v1771 = vsel %vm731, %v1766, 0
        %1773 = vmatprep.subr.mxu0 0.0
        %1774 = vmatpush1.msra.mxu0 %v1762
        %1775 = vmatprep.subr.mxu0 0.0
        %1776 = vmatpush1.msra.mxu0 0.0
        %1777 = vmatprep.subr.mxu0 0.0
        %1778 = vmatpush1.msra.mxu0 0.0
        %1779 = vmatprep.subr.mxu0 0.0
        %1780 = vmatpush1.msra.mxu0 0.0
        %1781 = vmatprep.subr.mxu0 0.0
        %1782 = vmatpush1.msra.mxu0 0.0
        %1783 = vmatprep.subr.mxu0 0.0
        %1784 = vmatpush1.msra.mxu0 0.0
        %1785 = vmatprep.subr.mxu0 0.0
        %1786 = vmatpush1.msra.mxu0 0.0
        %1787 = vmatprep.subr.mxu0 0.0
        %1788 = vmatpush1.msra.mxu0 0.0
        %1789 = vmatprep.subr.mxu0 0.0
        %1790 = vmatpush1.msra.mxu0 0.0
        %1791 = vmatprep.subr.mxu0 0.0
        %1792 = vmatpush1.msra.mxu0 0.0
        %1793 = vmatprep.subr.mxu0 0.0
        %1794 = vmatpush1.msra.mxu0 0.0
        %1795 = vmatprep.subr.mxu0 0.0
        %1796 = vmatpush1.msra.mxu0 0.0
        %1797 = vmatprep.subr.mxu0 0.0
        %1798 = vmatpush1.msra.mxu0 0.0
        %1799 = vmatprep.subr.mxu0 0.0
        %1800 = vmatpush1.msra.mxu0 0.0
        %1801 = vmatprep.subr.mxu0 0.0
        %1802 = vmatpush1.msra.mxu0 0.0
        %1803 = vmatprep.subr.mxu0 0.0
        %1804 = vmatpush1.msra.mxu0 0.0
        %1805 = vmatprep.subr.mxu0 0.0
        %1806 = vmatpush1.msra.mxu0 0.0
        %1807 = vmatprep.subr.mxu0 0.0
        %1808 = vmatpush1.msra.mxu0 0.0
        %1809 = vmatprep.subr.mxu0 0.0
        %1810 = vmatpush1.msra.mxu0 0.0
        %1811 = vmatprep.subr.mxu0 0.0
        %1812 = vmatpush1.msra.mxu0 0.0
        %1813 = vmatprep.subr.mxu0 0.0
        %1814 = vmatpush1.msra.mxu0 0.0
        %1815 = vmatprep.subr.mxu0 0.0
        %1816 = vmatpush1.msra.mxu0 0.0
        %1817 = vmatprep.subr.mxu0 0.0
        %1818 = vmatpush1.msra.mxu0 0.0
        %1819 = vmatprep.subr.mxu0 0.0
        %1820 = vmatpush1.msra.mxu0 0.0
        %1821 = vmatprep.subr.mxu0 0.0
        %1822 = vmatpush1.msra.mxu0 0.0
        %1823 = vmatprep.subr.mxu0 0.0
        %1824 = vmatpush1.msra.mxu0 0.0
        %1825 = vmatprep.subr.mxu0 0.0
        %1826 = vmatpush1.msra.mxu0 0.0
        %1827 = vmatprep.subr.mxu0 0.0
        %1828 = vmatpush1.msra.mxu0 0.0
        %1829 = vmatprep.subr.mxu0 0.0
        %1830 = vmatpush1.msra.mxu0 0.0
        %1831 = vmatprep.subr.mxu0 0.0
        %1832 = vmatpush1.msra.mxu0 0.0
        %1833 = vmatprep.subr.mxu0 0.0
        %1834 = vmatpush1.msra.mxu0 0.0
        %1835 = vmatprep.subr.mxu0 0.0
        %1836 = vmatpush1.msra.mxu0 0.0
        %1837 = vmatprep.mubr.f32.mxu0 0.0
        %1838 = vmatmul.mubr.f32.gmra.mrb[0].mxu0 %v1768
        %v1839 = vpop.f32.mrb[0].mxu0
        %v1840 = vadd.f32 0.0, %v1839
        %v1841 = vpop.f32.mrb[0].mxu0
        %1842 = vmatprep.mubr.f32.mxu0 0.0
        %1843 = vmatmul.mubr.f32.gmra.mrb[0].mxu0 %v1771
        %v1844 = vpop.f32.mrb[0].mxu0
        %v1845 = vadd.f32 0.0, %v1844
        %v1846 = vpop.f32.mrb[0].mxu0
        %1847 = vdwg.mxu0
        %v1848 = vsub.f32 %v1503, %v1840
        %v1849 = vsub.f32 %v1504, %v1845
        %v1850 = vmul.f32 %v1848, %v1848
        %v1851 = vmul.f32 %v1849, %v1849
        %v1852 = vsel %vm551, %v1850, 0.0
        %v1853 = vsel %vm551, %v1851, 0.0
        %v1854 = vadd.f32 %v1852, %v1853
        %1855 = vadd.xlane.f32.xlu0 %v1854
        %v1856 = vpop.xlane.xlu0 %1855
        %v1857 = vrot.slane %v1856, 4
        %v1858 = vadd.f32 %v1856, %v1857
        %v1859 = vrot.slane %v1858, 2
        %v1860 = vadd.f32 %v1858, %v1859
        %v1861 = vrot.slane %v1860, 1
        %v1862 = vadd.f32 %v1860, %v1861
        %s1863 = vtos %v1862
        %s1864 = sadd.f32 %s1519, %s1863
        %v1866 = vsel %vm551, %v1848, 0
        %v1869 = vsel %vm551, %v1849, 0
        %1871 = vmatprep.subr.mxu0 0.0
        %1872 = vmatpush1.msra.mxu0 %v451
        %1873 = vmatprep.subr.mxu0 0.0
        %1874 = vmatpush1.msra.mxu0 %v452
        %1875 = vmatprep.subr.mxu0 0.0
        %1876 = vmatpush1.msra.mxu0 %v453
        %1877 = vmatprep.subr.mxu0 0.0
        %1878 = vmatpush1.msra.mxu0 %v454
        %1879 = vmatprep.subr.mxu0 0.0
        %1880 = vmatpush1.msra.mxu0 0.0
        %1881 = vmatprep.subr.mxu0 0.0
        %1882 = vmatpush1.msra.mxu0 0.0
        %1883 = vmatprep.subr.mxu0 0.0
        %1884 = vmatpush1.msra.mxu0 0.0
        %1885 = vmatprep.subr.mxu0 0.0
        %1886 = vmatpush1.msra.mxu0 0.0
        %1887 = vmatprep.subr.mxu0 0.0
        %1888 = vmatpush1.msra.mxu0 0.0
        %1889 = vmatprep.subr.mxu0 0.0
        %1890 = vmatpush1.msra.mxu0 0.0
        %1891 = vmatprep.subr.mxu0 0.0
        %1892 = vmatpush1.msra.mxu0 0.0
        %1893 = vmatprep.subr.mxu0 0.0
        %1894 = vmatpush1.msra.mxu0 0.0
        %1895 = vmatprep.subr.mxu0 0.0
        %1896 = vmatpush1.msra.mxu0 0.0
        %1897 = vmatprep.subr.mxu0 0.0
        %1898 = vmatpush1.msra.mxu0 0.0
        %1899 = vmatprep.subr.mxu0 0.0
        %1900 = vmatpush1.msra.mxu0 0.0
        %1901 = vmatprep.subr.mxu0 0.0
        %1902 = vmatpush1.msra.mxu0 0.0
        %1903 = vmatprep.subr.mxu0 0.0
        %1904 = vmatpush1.msra.mxu0 0.0
        %1905 = vmatprep.subr.mxu0 0.0
        %1906 = vmatpush1.msra.mxu0 0.0
        %1907 = vmatprep.subr.mxu0 0.0
        %1908 = vmatpush1.msra.mxu0 0.0
        %1909 = vmatprep.subr.mxu0 0.0
        %1910 = vmatpush1.msra.mxu0 0.0
        %1911 = vmatprep.subr.mxu0 0.0
        %1912 = vmatpush1.msra.mxu0 0.0
        %1913 = vmatprep.subr.mxu0 0.0
        %1914 = vmatpush1.msra.mxu0 0.0
        %1915 = vmatprep.subr.mxu0 0.0
        %1916 = vmatpush1.msra.mxu0 0.0
        %1917 = vmatprep.subr.mxu0 0.0
        %1918 = vmatpush1.msra.mxu0 0.0
        %1919 = vmatprep.subr.mxu0 0.0
        %1920 = vmatpush1.msra.mxu0 0.0
        %1921 = vmatprep.subr.mxu0 0.0
        %1922 = vmatpush1.msra.mxu0 0.0
        %1923 = vmatprep.subr.mxu0 0.0
        %1924 = vmatpush1.msra.mxu0 0.0
        %1925 = vmatprep.subr.mxu0 0.0
        %1926 = vmatpush1.msra.mxu0 0.0
        %1927 = vmatprep.subr.mxu0 0.0
        %1928 = vmatpush1.msra.mxu0 0.0
        %1929 = vmatprep.subr.mxu0 0.0
        %1930 = vmatpush1.msra.mxu0 0.0
        %1931 = vmatprep.subr.mxu0 0.0
        %1932 = vmatpush1.msra.mxu0 0.0
        %1933 = vmatprep.subr.mxu0 0.0
        %1934 = vmatpush1.msra.mxu0 0.0
        %1935 = vmatprep.mubr.f32.mxu0 0.0
        %1936 = vmatmul.mubr.f32.gmra.mrb[0].mxu0 %v1866
        %v1937 = vpop.f32.mrb[0].mxu0
        %v1938 = vadd.f32 0.0, %v1937
        %v1939 = vpop.f32.mrb[0].mxu0
        %1940 = vmatprep.mubr.f32.mxu0 0.0
        %1941 = vmatmul.mubr.f32.gmra.mrb[0].mxu0 %v1869
        %v1942 = vpop.f32.mrb[0].mxu0
        %v1943 = vadd.f32 0.0, %v1942
        %v1944 = vpop.f32.mrb[0].mxu0
        %1945 = vdwg.mxu0
        %1946 = vadd.xlane.f32.xlu0 %v1852
        %v1947 = vpop.xlane.xlu0 %1946
        %1948 = vadd.xlane.f32.xlu0 %v1853
        %v1949 = vpop.xlane.xlu0 %1948
        %v1950 = vadd.f32 %v1947, %v633
        %v1951 = vadd.f32 %v1949, %v633
        %v1952 = vmul.f32 %v1938, 2.0
        %v1953 = vmul.f32 %v1943, 2.0
        %v1954 = vsub.f32 %v1950, %v1952
        %v1955 = vsub.f32 %v1951, %v1953
        %1956 = vmin.xlane.f32.xlu0 %v1954
        %v1957 = vpop.xlane.xlu0 %1956
        %1958 = vmin.xlane.f32.xlu0 %v1955
        %v1959 = vpop.xlane.xlu0 %1958
        %vm1960 = vcmp.le.f32.partialorder %v1954, %v1957
        %vm1961 = vcmp.le.f32.partialorder %v1955, %v1959
        %v1962 = vsel %vm1960, %v473, 128
        %v1963 = vsel %vm1961, %v473, 128
        %v1964 = vand.u32 %v1962, 65535
        %v1965 = vshra.s32 %v1962, 16
        %v1966 = vcvt.s32.f32 %v1964
        %v1967 = vcvt.s32.f32 %v1965
        %1968 = vmin.xlane.f32.xlu0 %v1967
        %v1969 = vpop.xlane.xlu0 %1968
        %vm1970 = vcmp.eq.f32.partialorder %v1967, %v1969
        %v1971 = vsel %vm1970, %v1966, inf
        %1972 = vmin.xlane.f32.xlu0 %v1971
        %v1973 = vpop.xlane.xlu0 %1972
        %v1974 = vcvt.f32.s32 %v1973
        %v1975 = vcvt.f32.s32 %v1969
        %v1976 = vshll.u32 %v1975, 16
        %v1977 = vadd.s32 %v1976, %v1974
        %v1978 = vand.u32 %v1963, 65535
        %v1979 = vshra.s32 %v1963, 16
        %v1980 = vcvt.s32.f32 %v1978
        %v1981 = vcvt.s32.f32 %v1979
        %1982 = vmin.xlane.f32.xlu0 %v1981
        %v1983 = vpop.xlane.xlu0 %1982
        %vm1984 = vcmp.eq.f32.partialorder %v1981, %v1983
        %v1985 = vsel %vm1984, %v1980, inf
        %1986 = vmin.xlane.f32.xlu0 %v1985
        %v1987 = vpop.xlane.xlu0 %1986
        %v1988 = vcvt.f32.s32 %v1987
        %v1989 = vcvt.f32.s32 %v1983
        %v1990 = vshll.u32 %v1989, 16
        %v1991 = vadd.s32 %v1990, %v1988
        %vm1992 = vcmp.eq.s32.totalorder %v473, %v1977
        %vm1993 = vcmp.eq.s32.totalorder %v473, %v1991
        %v1994 = vsel %vm1992, 1, 0
        %v1995 = vsel %vm1993, 1, 0
        %v1996 = vcvt.s32.f32 %v1994
        %v1997 = vcvt.s32.f32 %v1995
        %1998 = vmatprep.subr.mxu0 0.0
        %1999 = vmatpush1.msra.mxu0 %v455
        %2000 = vmatprep.subr.mxu0 0.0
        %2001 = vmatpush1.msra.mxu0 %v456
        %2002 = vmatprep.subr.mxu0 0.0
        %2003 = vmatpush1.msra.mxu0 %v457
        %2004 = vmatprep.subr.mxu0 0.0
        %2005 = vmatpush1.msra.mxu0 %v458
        %2006 = vmatprep.subr.mxu0 0.0
        %2007 = vmatpush1.msra.mxu0 %v459
        %2008 = vmatprep.subr.mxu0 0.0
        %2009 = vmatpush1.msra.mxu0 %v460
        %2010 = vmatprep.subr.mxu0 0.0
        %2011 = vmatpush1.msra.mxu0 %v461
        %2012 = vmatprep.subr.mxu0 0.0
        %2013 = vmatpush1.msra.mxu0 %v462
        %2014 = vmatprep.subr.mxu0 0.0
        %2015 = vmatpush1.msra.mxu0 %v463
        %2016 = vmatprep.subr.mxu0 0.0
        %2017 = vmatpush1.msra.mxu0 %v464
        %2018 = vmatprep.subr.mxu0 0.0
        %2019 = vmatpush1.msra.mxu0 %v465
        %2020 = vmatprep.subr.mxu0 0.0
        %2021 = vmatpush1.msra.mxu0 %v466
        %2022 = vmatprep.subr.mxu0 0.0
        %2023 = vmatpush1.msra.mxu0 %v467
        %2024 = vmatprep.subr.mxu0 0.0
        %2025 = vmatpush1.msra.mxu0 %v468
        %2026 = vmatprep.subr.mxu0 0.0
        %2027 = vmatpush1.msra.mxu0 %v469
        %2028 = vmatprep.subr.mxu0 0.0
        %2029 = vmatpush1.msra.mxu0 %v470
        %2030 = vmatprep.subr.mxu0 0.0
        %2031 = vmatpush1.msra.mxu0 0.0
        %2032 = vmatprep.subr.mxu0 0.0
        %2033 = vmatpush1.msra.mxu0 0.0
        %2034 = vmatprep.subr.mxu0 0.0
        %2035 = vmatpush1.msra.mxu0 0.0
        %2036 = vmatprep.subr.mxu0 0.0
        %2037 = vmatpush1.msra.mxu0 0.0
        %2038 = vmatprep.subr.mxu0 0.0
        %2039 = vmatpush1.msra.mxu0 0.0
        %2040 = vmatprep.subr.mxu0 0.0
        %2041 = vmatpush1.msra.mxu0 0.0
        %2042 = vmatprep.subr.mxu0 0.0
        %2043 = vmatpush1.msra.mxu0 0.0
        %2044 = vmatprep.subr.mxu0 0.0
        %2045 = vmatpush1.msra.mxu0 0.0
        %2046 = vmatprep.subr.mxu0 0.0
        %2047 = vmatpush1.msra.mxu0 0.0
        %2048 = vmatprep.subr.mxu0 0.0
        %2049 = vmatpush1.msra.mxu0 0.0
        %2050 = vmatprep.subr.mxu0 0.0
        %2051 = vmatpush1.msra.mxu0 0.0
        %2052 = vmatprep.subr.mxu0 0.0
        %2053 = vmatpush1.msra.mxu0 0.0
        %2054 = vmatprep.subr.mxu0 0.0
        %2055 = vmatpush1.msra.mxu0 0.0
        %2056 = vmatprep.subr.mxu0 0.0
        %2057 = vmatpush1.msra.mxu0 0.0
        %2058 = vmatprep.subr.mxu0 0.0
        %2059 = vmatpush1.msra.mxu0 0.0
        %2060 = vmatprep.subr.mxu0 0.0
        %2061 = vmatpush1.msra.mxu0 0.0
        %2062 = vmatprep.mubr.f32.mxu0 0.0
        %2063 = vmatmul.mubr.f32.gmra.mrb[0].mxu0 %v1996
        %v2064 = vpop.f32.mrb[0].mxu0
        %v2065 = vadd.f32 0.0, %v2064
        %v2066 = vpop.f32.mrb[0].mxu0
        %2067 = vmatprep.mubr.f32.mxu0 0.0
        %2068 = vmatmul.mubr.f32.gmra.mrb[0].mxu0 %v1997
        %v2069 = vpop.f32.mrb[0].mxu0
        %v2070 = vadd.f32 0.0, %v2069
        %v2071 = vpop.f32.mrb[0].mxu0
        %2072 = vdwg.mxu0
        %v2073 = vsub.f32 %v1848, %v2065
        %v2074 = vsub.f32 %v1849, %v2070
        %v2075 = vmul.f32 %v2073, %v2073
        %v2076 = vmul.f32 %v2074, %v2074
        %v2077 = vsel %vm551, %v2075, 0.0
        %v2078 = vsel %vm551, %v2076, 0.0
        %v2079 = vadd.f32 %v2077, %v2078
        %2080 = vadd.xlane.f32.xlu0 %v2079
        %v2081 = vpop.xlane.xlu0 %2080
        %v2082 = vrot.slane %v2081, 4
        %v2083 = vadd.f32 %v2081, %v2082
        %v2084 = vrot.slane %v2083, 2
        %v2085 = vadd.f32 %v2083, %v2084
        %v2086 = vrot.slane %v2085, 1
        %v2087 = vadd.f32 %v2085, %v2086
        %s2088 = vtos %v2087
        %s2089 = sadd.f32 %s1864, %s2088
        %v2090 = vld [vmem:[%s445] sm:$0xff]
        %v2091 = vld [vmem:[%s445 + $0x8] sm:$0xff]
        %v2092 = vsub.f32 %v2090, %v2073
        %v2093 = vsub.f32 %v2091, %v2074
        %2094 = vst.msk [vmem:[%s435] sm:$0xff] %vm551, %v2092
        %2095 = vst.msk [vmem:[%s435 + $0x8] sm:$0xff] %vm551, %v2093
        %v2096 = vstv %s2089
        %vm2097 = vcmask 0
        %2098 = vst.msk [vmem:[%s450] sm:$0x1] %vm2097, %v2096
        %s2099 = sand.u32 %s293, 1
        %s2100 = scalar_lea.sflag [#allocation3], %s2099
        %s2101 = sand.u32 %s293, 1
        %s2102 = smul.addr %s2101, 16
        %s2103 = scalar_lea.vmem [#allocation2], %s2102
        %p2104 = scmp.lt.s32.totalorder %s28, 1
        %s2105 = scalar_select %p2104, %s28, 1
        %s2106 = scalar_lea.vmem %s13, %s2105
        // Predicated region
        $region69: #{tpu_custom_call.1} parent=67 // pred_check
          %p2107 = pneg %p303
        $region70: #{tpu_custom_call.1} parent=67 // pred_check_branch
          %2109 = sbr.rel (%p2107) target = $region72
        $region71: #{tpu_custom_call.1} parent=67 // pred_region
          %s2110 = smul.u32 2, %s28
          %s2112 = ssub.s32 256, 256
          %2113 = vsyncadd %s2100, %s2112
          %s2114 = smul.addr %s2110, 128
          %s2115 = scalar_lea.hbm %s12, %s2114
          %s2116 = sshll.u32 %s2103, 4
          %s2117 = int_to_ptr.vmem [resolvable:$true] %s2116
          %2122 = dma.vmem_to_hbm [thread:$0]  %s2117, 256, %s2115, %s2100, 128, 128, 8
        $region72: #{tpu_custom_call.1} parent=67 // pred_fallthru
          _
        // Predicated region
        $region73: #{tpu_custom_call.1} parent=67 // pred_check
          %p2123 = pneg %p329
        $region74: #{tpu_custom_call.1} parent=67 // pred_check_branch
          %2125 = sbr.rel (%p2123) target = $region76
        $region75: #{tpu_custom_call.1} parent=67 // pred_region
          _
        $region76: #{tpu_custom_call.1} parent=67 // pred_fallthru
          _
      $region68: #{tpu_custom_call.1} parent=5 // pred_fallthru
        _
      %p2126 = scmp.le.s32.totalorder 2, %s23
      // Predicated region
      $region77: #{tpu_custom_call.1} parent=5 // pred_check
        %p2127 = pneg %p2126
      $region78: #{tpu_custom_call.1} parent=5 // pred_check_branch
        %2129 = sbr.rel (%p2127) target = $region80
      $region79: #{tpu_custom_call.1} parent=5 // pred_region
        %s2130 = ssub.s32 %s23, 2
        // Predicated region
        $region81: #{tpu_custom_call.1} parent=79 // pred_check
          %p2131 = pneg %p309
        $region82: #{tpu_custom_call.1} parent=79 // pred_check_branch
          %2133 = sbr.rel (%p2131) target = $region84
        $region83: #{tpu_custom_call.1} parent=79 // pred_region
          %s2134 = sand.u32 %s294, 1
          %s2135 = scalar_lea.sflag [#allocation3], %s2134
          %s2136 = sand.u32 %s294, 1
          %s2137 = smul.addr %s2136, 16
          %s2138 = scalar_lea.vmem [#allocation2], %s2137
          %2139 = dma.done %s2135, 256
        $region84: #{tpu_custom_call.1} parent=79 // pred_fallthru
          _
        // Predicated region
        $region85: #{tpu_custom_call.1} parent=79 // pred_check
          %p2140 = pneg %p335
        $region86: #{tpu_custom_call.1} parent=79 // pred_check_branch
          %2142 = sbr.rel (%p2140) target = $region88
        $region87: #{tpu_custom_call.1} parent=79 // pred_region
          %p2143 = scmp.lt.s32.totalorder %s29, 1
          %s2144 = scalar_select %p2143, %s29, 1
          %s2145 = scalar_lea.vmem %s13, %s2144
        $region88: #{tpu_custom_call.1} parent=79 // pred_fallthru
          _
      $region80: #{tpu_custom_call.1} parent=5 // pred_fallthru
        _
    $region6: #{tpu_custom_call.1} parent=1 // loop_footer
      %s27 = sadd.s32 1, %s23
    $region7: #{tpu_custom_call.1} parent=1 // loop_footer_branch
      %22 = sbr.rel target = $region3
    $region8: #{tpu_custom_call.1} parent=1 // loop_exit
      _
    %2146 = vsyncpa [#allocation3], 1
    %s2147 = scalar_lea.sflag [#allocation3], 1
    %2148 = vsyncpa %s2147, 1

</llo_original>
